<compile_context>
chip_gen: v6e
topology: v6e:2x2x1
jax: 0.10.0
libtpu: 0.0.40
codegen_flags: <defaults>
</compile_context>

<pallas_src>
import functools

import jax
import jax.numpy as jnp
from jax import lax
from jax.experimental import pallas as pl
from jax.experimental.pallas import tpu as pltpu

BN_EPS = 1e-5


def _residual2_kernel(use_1x1conv, *refs):
    if use_1x1conv:
        (x_ref, sm_ref, sp_ref, p_ref,
         band1_ref, cb1_ref, g1_ref, bt1_ref,
         band2_ref, cb2_ref, g2_ref, bt2_ref,
         band3_ref, cb3_ref, out_ref) = refs
    else:
        (x_ref, sm_ref, sp_ref, p_ref,
         band1_ref, cb1_ref, g1_ref, bt1_ref,
         band2_ref, cb2_ref, g2_ref, bt2_ref,
         out_ref) = refs

    x = x_ref[...]          # (M, W*Cin) lane-dense rows (M = N*H)
    sm = sm_ref[...]        # (M, M) block-diag "previous row" shift
    sp = sp_ref[...]        # (M, M) block-diag "next row" shift
    pmat = p_ref[...]       # (W*C, W*C) per-channel averaging / broadcast matrix

    def conv3x3(inp, band_ref):
        # Three K=W*Cin band matmuls (one per kernel row); the W zero-padding is
        # built into the band matrices and the H boundary is handled by the two
        # row-shift matmuls -> no relayout copies, no padded scratch.
        z0 = jnp.dot(inp, band_ref[0], preferred_element_type=jnp.float32)
        z1 = jnp.dot(inp, band_ref[1], preferred_element_type=jnp.float32)
        z2 = jnp.dot(inp, band_ref[2], preferred_element_type=jnp.float32)
        return (z1
                + jnp.dot(sm, z0, preferred_element_type=jnp.float32)
                + jnp.dot(sp, z2, preferred_element_type=jnp.float32))

    def bn_train(y, g_col, b_col):
        # Fused train-mode BatchNorm2d: per-channel mean / E[y^2] computed and
        # broadcast back to every (w, c) column in one lane-dense matmul each.
        mean = jnp.sum(jnp.dot(y, pmat, preferred_element_type=jnp.float32),
                       axis=0, keepdims=True)                     # (1, W*C)
        ex2 = jnp.sum(jnp.dot(y * y, pmat, preferred_element_type=jnp.float32),
                      axis=0, keepdims=True)                      # (1, W*C)
        var = ex2 - mean * mean                                   # biased variance
        return (y - mean) * lax.rsqrt(var + BN_EPS) * g_col + b_col

    # conv1 -> bn1 -> relu   (conv bias is mathematically absorbed by BN, kept
    # anyway for fidelity; it is a single broadcast add)
    y = conv3x3(x, band1_ref) + cb1_ref[...]
    y = jnp.maximum(bn_train(y, g1_ref[...], bt1_ref[...]), 0.0)

    # conv2 -> bn2
    y = conv3x3(y, band2_ref) + cb2_ref[...]
    y = bn_train(y, g2_ref[...], bt2_ref[...])

    # residual branch
    if use_1x1conv:
        skip = jnp.dot(x, band3_ref[...],
                       preferred_element_type=jnp.float32) + cb3_ref[...]
    else:
        skip = x            # identity skip requires Cin == C (as in PyTorch)

    out_ref[...] = jnp.maximum(y + skip, 0.0)


def _make_band3x3(w, W):
    """(Cout, Cin, 3, 3) -> (3, W*Cin, W*Cout) banded per-kernel-row matrices.

    band[kh, w_in*Cin+ci, w_out*Cout+co] = w[co, ci, kh, w_in - w_out + 1]
    (zero outside the 3-tap band -> implicit zero padding along W).
    """
    wt = jnp.transpose(w.astype(jnp.float32), (2, 3, 1, 0))        # (3,3,Cin,Cout)
    Cin, Cout = wt.shape[2], wt.shape[3]
    w_in = jnp.arange(W)[:, None]
    w_out = jnp.arange(W)[None, :]
    kw = w_in - w_out + 1                                          # (W, W)
    valid = ((kw >= 0) & (kw <= 2)).astype(jnp.float32)
    band = wt[:, jnp.clip(kw, 0, 2)]                               # (3,W,W,Cin,Cout)
    band = band * valid[None, :, :, None, None]
    band = jnp.transpose(band, (0, 1, 3, 2, 4))                    # (3,W,Cin,W,Cout)
    return band.reshape(3, W * Cin, W * Cout)


def _make_band1x1(w, W):
    """(Cout, Cin, 1, 1) -> block-diagonal (W*Cin, W*Cout) for the 1x1 skip."""
    wm = jnp.transpose(w[:, :, 0, 0].astype(jnp.float32), (1, 0))  # (Cin, Cout)
    Cin, Cout = wm.shape
    eye = jnp.eye(W, dtype=jnp.float32)
    band = eye[:, None, :, None] * wm[None, :, None, :]            # (W,Cin,W,Cout)
    return band.reshape(W * Cin, W * Cout)


def _full_spec(shape):
    nd = len(shape)
    return pl.BlockSpec(shape, lambda i, nd=nd: (0,) * nd)


def residual2_pallas(x_nchw, p, use_1x1conv):
    N, Cin, H, W = x_nchw.shape
    C = p['w1'].shape[0]
    WC = W * C
    Lin = W * Cin
    M = N * H

    # NCHW -> lane-dense (N*H, W*Cin) rows (one-time XLA glue).
    x_rows = jnp.transpose(x_nchw, (0, 2, 3, 1)).astype(jnp.float32).reshape(M, Lin)

    # Block-diagonal (per-image) row-shift matrices: up = Sm @ z, down = Sp @ z.
    r = jnp.arange(M)
    same_img = (r[:, None] // H) == (r[None, :] // H)
    sm = ((r[None, :] == r[:, None] - 1) & same_img).astype(jnp.float32)
    sp = ((r[None, :] == r[:, None] + 1) & same_img).astype(jnp.float32)

    # Per-channel averaging/broadcast matrix for fused BN statistics.
    cidx = jnp.arange(WC) % C
    pmat = (cidx[:, None] == cidx[None, :]).astype(jnp.float32) / float(N * H * W)

    band1 = _make_band3x3(p['w1'], W)          # (3, W*Cin, W*C)
    band2 = _make_band3x3(p['w2'], W)          # (3, W*C,   W*C)

    def tile_c(v):                             # per-channel (C,) -> per-column (1, W*C)
        return jnp.tile(v.astype(jnp.float32), W).reshape(1, WC)

    args = [x_rows, sm, sp, pmat,
            band1, tile_c(p['b1']), tile_c(p['g1']), tile_c(p['be1']),
            band2, tile_c(p['b2']), tile_c(p['g2']), tile_c(p['be2'])]
    if use_1x1conv:
        args += [_make_band1x1(p['w3'], W), tile_c(p['b3'])]

    out_bytes = M * WC * 4
    resident = sum(int(a.size) * 4 for a in args) + out_bytes
    vmem_limit = int(max(8 * 1024 * 1024, 4 * resident))

    flops = (2 * M * Lin * WC * 3           # conv1 tap matmuls
             + 2 * M * WC * WC * 3          # conv2 tap matmuls
             + 2 * M * M * WC * 4           # row-shift matmuls
             + 2 * M * WC * WC * 4)         # BN statistics matmuls
    if use_1x1conv:
        flops += 2 * M * Lin * WC
    cost = pl.CostEstimate(flops=int(flops), transcendentals=int(2 * WC),
                           bytes_accessed=int(resident))

    out_rows = pl.pallas_call(
        functools.partial(_residual2_kernel, use_1x1conv),
        grid=(1,),
        in_specs=[_full_spec(a.shape) for a in args],
        out_specs=_full_spec((M, WC)),
        out_shape=jax.ShapeDtypeStruct((M, WC), jnp.float32),
        compiler_params=pltpu.CompilerParams(
            dimension_semantics=("arbitrary",),
            vmem_limit_bytes=vmem_limit),
        cost_estimate=cost,
    )(*args)

    return jnp.transpose(out_rows.reshape(N, H, W, C), (0, 3, 1, 2))   # back to NCHW


def residual2_reference(x_nchw, p, use_1x1conv):
    """Pure-JAX reference (NCHW, matches the PyTorch forward in train mode)."""
    def conv(x, w, b, pad):
        out = lax.conv_general_dilated(
            x, w, window_strides=(1, 1), padding=[(pad, pad), (pad, pad)],
            dimension_numbers=('NCHW', 'OIHW', 'NCHW'))
        return out + b.reshape(1, -1, 1, 1)

    def bn(y, g, be):
        mean = jnp.mean(y, axis=(0, 2, 3), keepdims=True)
        var = jnp.mean((y - mean) ** 2, axis=(0, 2, 3), keepdims=True)
        return ((y - mean) / jnp.sqrt(var + BN_EPS)) * g.reshape(1, -1, 1, 1) \
            + be.reshape(1, -1, 1, 1)

    y = jax.nn.relu(bn(conv(x_nchw, p['w1'], p['b1'], 1), p['g1'], p['be1']))
    y = bn(conv(y, p['w2'], p['b2'], 1), p['g2'], p['be2'])
    x = conv(x_nchw, p['w3'], p['b3'], 0) if use_1x1conv else x_nchw
    return jax.nn.relu(y + x)


def make_params(key, cin, c, use_1x1conv):
    ks = jax.random.split(key, 10)
    p = {
        'w1': 0.2 * jax.random.normal(ks[0], (c, cin, 3, 3), jnp.float32),
        'b1': 0.1 * jax.random.normal(ks[1], (c,), jnp.float32),
        'w2': 0.2 * jax.random.normal(ks[2], (c, c, 3, 3), jnp.float32),
        'b2': 0.1 * jax.random.normal(ks[3], (c,), jnp.float32),
        'g1': 1.0 + 0.1 * jax.random.normal(ks[4], (c,), jnp.float32),
        'be1': 0.1 * jax.random.normal(ks[5], (c,), jnp.float32),
        'g2': 1.0 + 0.1 * jax.random.normal(ks[6], (c,), jnp.float32),
        'be2': 0.1 * jax.random.normal(ks[7], (c,), jnp.float32),
    }
    if use_1x1conv:
        p['w3'] = 0.2 * jax.random.normal(ks[8], (c, cin, 1, 1), jnp.float32)
        p['b3'] = 0.1 * jax.random.normal(ks[9], (c,), jnp.float32)
    return p


if __name__ == "__main__":
    key = jax.random.PRNGKey(0)
    k1, k2, k3, k4 = jax.random.split(key, 4)

    # Case 1: channel expansion, 1x1 projection on the skip path.
    x1 = jax.random.normal(k1, (2, 4, 16, 16), jnp.float32)
    p1 = make_params(k2, 4, 8, True)
    out1 = jax.block_until_ready(residual2_pallas(x1, p1, True))
    ref1 = residual2_reference(x1, p1, True)
    assert out1.shape == ref1.shape
    err1 = float(jnp.max(jnp.abs(out1 - ref1)))
    assert jnp.allclose(out1, ref1, rtol=1e-4, atol=1e-4), err1

    # Case 2: default path (use_1x1conv=False, identity skip, Cin == num_channels).
    x2 = jax.random.normal(k3, (2, 8, 16, 16), jnp.float32)
    p2 = make_params(k4, 8, 8, False)
    out2 = jax.block_until_ready(residual2_pallas(x2, p2, False))
    ref2 = residual2_reference(x2, p2, False)
    err2 = float(jnp.max(jnp.abs(out2 - ref2)))
    assert jnp.allclose(out2, ref2, rtol=1e-4, atol=1e-4), err2

    print("KERNEL_OK")
</pallas_src>

<mosaic_0001>
module attributes {stable_mosaic.version = 11 : i64} {
  func.func @_residual2_kernel(%arg0: i32, %arg1: memref<32x64xf32, #tpu.memory_space<vmem>>, %arg2: memref<32x32xf32, #tpu.memory_space<vmem>>, %arg3: memref<32x32xf32, #tpu.memory_space<vmem>>, %arg4: memref<128x128xf32, #tpu.memory_space<vmem>>, %arg5: memref<3x64x128xf32, #tpu.memory_space<vmem>>, %arg6: memref<1x128xf32, #tpu.memory_space<vmem>>, %arg7: memref<1x128xf32, #tpu.memory_space<vmem>>, %arg8: memref<1x128xf32, #tpu.memory_space<vmem>>, %arg9: memref<3x128x128xf32, #tpu.memory_space<vmem>>, %arg10: memref<1x128xf32, #tpu.memory_space<vmem>>, %arg11: memref<1x128xf32, #tpu.memory_space<vmem>>, %arg12: memref<1x128xf32, #tpu.memory_space<vmem>>, %arg13: memref<64x128xf32, #tpu.memory_space<vmem>>, %arg14: memref<1x128xf32, #tpu.memory_space<vmem>>, %arg15: memref<32x128xf32, #tpu.memory_space<vmem>>) attributes {dimension_semantics = [#tpu.dimension_semantics<arbitrary>], iteration_bounds = array<i64: 1>, scalar_prefetch = 0 : i64, scratch_operands = 0 : i64, tpu.core_type = #tpu.core_type<tc>, window_params = [{pipeline_mode = #tpu.pipeline_mode<synchronous>, transform_indices = @transform_0, window_bounds = array<i64: 32, 64>}, {pipeline_mode = #tpu.pipeline_mode<synchronous>, transform_indices = @transform_1, window_bounds = array<i64: 32, 32>}, {pipeline_mode = #tpu.pipeline_mode<synchronous>, transform_indices = @transform_2, window_bounds = array<i64: 32, 32>}, {pipeline_mode = #tpu.pipeline_mode<synchronous>, transform_indices = @transform_3, window_bounds = array<i64: 128, 128>}, {pipeline_mode = #tpu.pipeline_mode<synchronous>, transform_indices = @transform_4, window_bounds = array<i64: 3, 64, 128>}, {pipeline_mode = #tpu.pipeline_mode<synchronous>, transform_indices = @transform_5, window_bounds = array<i64: 1, 128>}, {pipeline_mode = #tpu.pipeline_mode<synchronous>, transform_indices = @transform_6, window_bounds = array<i64: 1, 128>}, {pipeline_mode = #tpu.pipeline_mode<synchronous>, transform_indices = @transform_7, window_bounds = array<i64: 1, 128>}, {pipeline_mode = #tpu.pipeline_mode<synchronous>, transform_indices = @transform_8, window_bounds = array<i64: 3, 128, 128>}, {pipeline_mode = #tpu.pipeline_mode<synchronous>, transform_indices = @transform_9, window_bounds = array<i64: 1, 128>}, {pipeline_mode = #tpu.pipeline_mode<synchronous>, transform_indices = @transform_10, window_bounds = array<i64: 1, 128>}, {pipeline_mode = #tpu.pipeline_mode<synchronous>, transform_indices = @transform_11, window_bounds = array<i64: 1, 128>}, {pipeline_mode = #tpu.pipeline_mode<synchronous>, transform_indices = @transform_12, window_bounds = array<i64: 64, 128>}, {pipeline_mode = #tpu.pipeline_mode<synchronous>, transform_indices = @transform_13, window_bounds = array<i64: 1, 128>}, {pipeline_mode = #tpu.pipeline_mode<synchronous>, transform_indices = @transform_14, window_bounds = array<i64: 32, 128>}]} {
    %c0 = arith.constant 0 : index
    %c0_0 = arith.constant 0 : index
    %0 = vector.load %arg1[%c0, %c0_0] : memref<32x64xf32, #tpu.memory_space<vmem>>, vector<32x64xf32>
    %c0_1 = arith.constant 0 : index
    %c0_2 = arith.constant 0 : index
    %1 = vector.load %arg2[%c0_1, %c0_2] : memref<32x32xf32, #tpu.memory_space<vmem>>, vector<32x32xf32>
    %c0_3 = arith.constant 0 : index
    %c0_4 = arith.constant 0 : index
    %2 = vector.load %arg3[%c0_3, %c0_4] : memref<32x32xf32, #tpu.memory_space<vmem>>, vector<32x32xf32>
    %c0_5 = arith.constant 0 : index
    %c0_6 = arith.constant 0 : index
    %3 = vector.load %arg4[%c0_5, %c0_6] : memref<128x128xf32, #tpu.memory_space<vmem>>, vector<128x128xf32>
    %c0_7 = arith.constant 0 : index
    %c0_8 = arith.constant 0 : index
    %c0_9 = arith.constant 0 : index
    %4 = vector.load %arg5[%c0_7, %c0_8, %c0_9] : memref<3x64x128xf32, #tpu.memory_space<vmem>>, vector<1x64x128xf32>
    %5 = vector.shape_cast %4 : vector<1x64x128xf32> to vector<64x128xf32>
    %cst = arith.constant dense<0.000000e+00> : vector<32x128xf32>
    %6 = tpu.matmul %0, %5, %cst {dimension_numbers = #tpu.dot_dimension_numbers<[1], [0], [0], [1], [0, 0, 1, 1], [], []>} : vector<32x64xf32>, vector<64x128xf32>, vector<32x128xf32> -> vector<32x128xf32>
    %c1 = arith.constant 1 : index
    %c0_10 = arith.constant 0 : index
    %c0_11 = arith.constant 0 : index
    %7 = vector.load %arg5[%c1, %c0_10, %c0_11] : memref<3x64x128xf32, #tpu.memory_space<vmem>>, vector<1x64x128xf32>
    %8 = vector.shape_cast %7 : vector<1x64x128xf32> to vector<64x128xf32>
    %cst_12 = arith.constant dense<0.000000e+00> : vector<32x128xf32>
    %9 = tpu.matmul %0, %8, %cst_12 {dimension_numbers = #tpu.dot_dimension_numbers<[1], [0], [0], [1], [0, 0, 1, 1], [], []>} : vector<32x64xf32>, vector<64x128xf32>, vector<32x128xf32> -> vector<32x128xf32>
    %c2 = arith.constant 2 : index
    %c0_13 = arith.constant 0 : index
    %c0_14 = arith.constant 0 : index
    %10 = vector.load %arg5[%c2, %c0_13, %c0_14] : memref<3x64x128xf32, #tpu.memory_space<vmem>>, vector<1x64x128xf32>
    %11 = vector.shape_cast %10 : vector<1x64x128xf32> to vector<64x128xf32>
    %cst_15 = arith.constant dense<0.000000e+00> : vector<32x128xf32>
    %12 = tpu.matmul %0, %11, %cst_15 {dimension_numbers = #tpu.dot_dimension_numbers<[1], [0], [0], [1], [0, 0, 1, 1], [], []>} : vector<32x64xf32>, vector<64x128xf32>, vector<32x128xf32> -> vector<32x128xf32>
    %cst_16 = arith.constant dense<0.000000e+00> : vector<32x128xf32>
    %13 = tpu.matmul %1, %6, %cst_16 {dimension_numbers = #tpu.dot_dimension_numbers<[1], [0], [0], [1], [0, 0, 1, 1], [], []>} : vector<32x32xf32>, vector<32x128xf32>, vector<32x128xf32> -> vector<32x128xf32>
    %14 = arith.addf %9, %13 : vector<32x128xf32>
    %cst_17 = arith.constant dense<0.000000e+00> : vector<32x128xf32>
    %15 = tpu.matmul %2, %12, %cst_17 {dimension_numbers = #tpu.dot_dimension_numbers<[1], [0], [0], [1], [0, 0, 1, 1], [], []>} : vector<32x32xf32>, vector<32x128xf32>, vector<32x128xf32> -> vector<32x128xf32>
    %16 = arith.addf %14, %15 : vector<32x128xf32>
    %c0_18 = arith.constant 0 : index
    %c0_19 = arith.constant 0 : index
    %17 = vector.load %arg6[%c0_18, %c0_19] : memref<1x128xf32, #tpu.memory_space<vmem>>, vector<1x128xf32>
    %18 = vector.broadcast %17 : vector<1x128xf32> to vector<32x128xf32>
    %19 = arith.addf %16, %18 : vector<32x128xf32>
    %c0_20 = arith.constant 0 : index
    %c0_21 = arith.constant 0 : index
    %20 = vector.load %arg7[%c0_20, %c0_21] : memref<1x128xf32, #tpu.memory_space<vmem>>, vector<1x128xf32>
    %c0_22 = arith.constant 0 : index
    %c0_23 = arith.constant 0 : index
    %21 = vector.load %arg8[%c0_22, %c0_23] : memref<1x128xf32, #tpu.memory_space<vmem>>, vector<1x128xf32>
    %cst_24 = arith.constant dense<0.000000e+00> : vector<32x128xf32>
    %22 = tpu.matmul %19, %3, %cst_24 {dimension_numbers = #tpu.dot_dimension_numbers<[1], [0], [0], [1], [0, 0, 1, 1], [], []>} : vector<32x128xf32>, vector<128x128xf32>, vector<32x128xf32> -> vector<32x128xf32>
    %cst_25 = arith.constant dense<0.000000e+00> : vector<128xf32>
    %23 = vector.multi_reduction <add>, %22, %cst_25 [0] : vector<32x128xf32> to vector<128xf32>
    %24 = vector.shape_cast %23 : vector<128xf32> to vector<1x128xf32>
    %25 = arith.mulf %19, %19 : vector<32x128xf32>
    %cst_26 = arith.constant dense<0.000000e+00> : vector<32x128xf32>
    %26 = tpu.matmul %25, %3, %cst_26 {dimension_numbers = #tpu.dot_dimension_numbers<[1], [0], [0], [1], [0, 0, 1, 1], [], []>} : vector<32x128xf32>, vector<128x128xf32>, vector<32x128xf32> -> vector<32x128xf32>
    %cst_27 = arith.constant dense<0.000000e+00> : vector<128xf32>
    %27 = vector.multi_reduction <add>, %26, %cst_27 [0] : vector<32x128xf32> to vector<128xf32>
    %28 = vector.shape_cast %27 : vector<128xf32> to vector<1x128xf32>
    %29 = arith.mulf %24, %24 : vector<1x128xf32>
    %30 = arith.subf %28, %29 : vector<1x128xf32>
    %31 = vector.broadcast %24 : vector<1x128xf32> to vector<32x128xf32>
    %32 = arith.subf %19, %31 : vector<32x128xf32>
    %cst_28 = arith.constant 9.99999974E-6 : f32
    %33 = vector.broadcast %cst_28 : f32 to vector<1x128xf32>
    %34 = arith.addf %30, %33 : vector<1x128xf32>
    %35 = math.rsqrt %34 : vector<1x128xf32>
    %36 = vector.broadcast %35 : vector<1x128xf32> to vector<32x128xf32>
    %37 = arith.mulf %32, %36 : vector<32x128xf32>
    %38 = vector.broadcast %20 : vector<1x128xf32> to vector<32x128xf32>
    %39 = arith.mulf %37, %38 : vector<32x128xf32>
    %40 = vector.broadcast %21 : vector<1x128xf32> to vector<32x128xf32>
    %41 = arith.addf %39, %40 : vector<32x128xf32>
    %cst_29 = arith.constant 0.000000e+00 : f32
    %42 = vector.broadcast %cst_29 : f32 to vector<32x128xf32>
    %43 = arith.maximumf %41, %42 : vector<32x128xf32>
    %c0_30 = arith.constant 0 : index
    %c0_31 = arith.constant 0 : index
    %c0_32 = arith.constant 0 : index
    %44 = vector.load %arg9[%c0_30, %c0_31, %c0_32] : memref<3x128x128xf32, #tpu.memory_space<vmem>>, vector<1x128x128xf32>
    %45 = vector.shape_cast %44 : vector<1x128x128xf32> to vector<128x128xf32>
    %cst_33 = arith.constant dense<0.000000e+00> : vector<32x128xf32>
    %46 = tpu.matmul %43, %45, %cst_33 {dimension_numbers = #tpu.dot_dimension_numbers<[1], [0], [0], [1], [0, 0, 1, 1], [], []>} : vector<32x128xf32>, vector<128x128xf32>, vector<32x128xf32> -> vector<32x128xf32>
    %c1_34 = arith.constant 1 : index
    %c0_35 = arith.constant 0 : index
    %c0_36 = arith.constant 0 : index
    %47 = vector.load %arg9[%c1_34, %c0_35, %c0_36] : memref<3x128x128xf32, #tpu.memory_space<vmem>>, vector<1x128x128xf32>
    %48 = vector.shape_cast %47 : vector<1x128x128xf32> to vector<128x128xf32>
    %cst_37 = arith.constant dense<0.000000e+00> : vector<32x128xf32>
    %49 = tpu.matmul %43, %48, %cst_37 {dimension_numbers = #tpu.dot_dimension_numbers<[1], [0], [0], [1], [0, 0, 1, 1], [], []>} : vector<32x128xf32>, vector<128x128xf32>, vector<32x128xf32> -> vector<32x128xf32>
    %c2_38 = arith.constant 2 : index
    %c0_39 = arith.constant 0 : index
    %c0_40 = arith.constant 0 : index
    %50 = vector.load %arg9[%c2_38, %c0_39, %c0_40] : memref<3x128x128xf32, #tpu.memory_space<vmem>>, vector<1x128x128xf32>
    %51 = vector.shape_cast %50 : vector<1x128x128xf32> to vector<128x128xf32>
    %cst_41 = arith.constant dense<0.000000e+00> : vector<32x128xf32>
    %52 = tpu.matmul %43, %51, %cst_41 {dimension_numbers = #tpu.dot_dimension_numbers<[1], [0], [0], [1], [0, 0, 1, 1], [], []>} : vector<32x128xf32>, vector<128x128xf32>, vector<32x128xf32> -> vector<32x128xf32>
    %cst_42 = arith.constant dense<0.000000e+00> : vector<32x128xf32>
    %53 = tpu.matmul %1, %46, %cst_42 {dimension_numbers = #tpu.dot_dimension_numbers<[1], [0], [0], [1], [0, 0, 1, 1], [], []>} : vector<32x32xf32>, vector<32x128xf32>, vector<32x128xf32> -> vector<32x128xf32>
    %54 = arith.addf %49, %53 : vector<32x128xf32>
    %cst_43 = arith.constant dense<0.000000e+00> : vector<32x128xf32>
    %55 = tpu.matmul %2, %52, %cst_43 {dimension_numbers = #tpu.dot_dimension_numbers<[1], [0], [0], [1], [0, 0, 1, 1], [], []>} : vector<32x32xf32>, vector<32x128xf32>, vector<32x128xf32> -> vector<32x128xf32>
    %56 = arith.addf %54, %55 : vector<32x128xf32>
    %c0_44 = arith.constant 0 : index
    %c0_45 = arith.constant 0 : index
    %57 = vector.load %arg10[%c0_44, %c0_45] : memref<1x128xf32, #tpu.memory_space<vmem>>, vector<1x128xf32>
    %58 = vector.broadcast %57 : vector<1x128xf32> to vector<32x128xf32>
    %59 = arith.addf %56, %58 : vector<32x128xf32>
    %c0_46 = arith.constant 0 : index
    %c0_47 = arith.constant 0 : index
    %60 = vector.load %arg11[%c0_46, %c0_47] : memref<1x128xf32, #tpu.memory_space<vmem>>, vector<1x128xf32>
    %c0_48 = arith.constant 0 : index
    %c0_49 = arith.constant 0 : index
    %61 = vector.load %arg12[%c0_48, %c0_49] : memref<1x128xf32, #tpu.memory_space<vmem>>, vector<1x128xf32>
    %cst_50 = arith.constant dense<0.000000e+00> : vector<32x128xf32>
    %62 = tpu.matmul %59, %3, %cst_50 {dimension_numbers = #tpu.dot_dimension_numbers<[1], [0], [0], [1], [0, 0, 1, 1], [], []>} : vector<32x128xf32>, vector<128x128xf32>, vector<32x128xf32> -> vector<32x128xf32>
    %cst_51 = arith.constant dense<0.000000e+00> : vector<128xf32>
    %63 = vector.multi_reduction <add>, %62, %cst_51 [0] : vector<32x128xf32> to vector<128xf32>
    %64 = vector.shape_cast %63 : vector<128xf32> to vector<1x128xf32>
    %65 = arith.mulf %59, %59 : vector<32x128xf32>
    %cst_52 = arith.constant dense<0.000000e+00> : vector<32x128xf32>
    %66 = tpu.matmul %65, %3, %cst_52 {dimension_numbers = #tpu.dot_dimension_numbers<[1], [0], [0], [1], [0, 0, 1, 1], [], []>} : vector<32x128xf32>, vector<128x128xf32>, vector<32x128xf32> -> vector<32x128xf32>
    %cst_53 = arith.constant dense<0.000000e+00> : vector<128xf32>
    %67 = vector.multi_reduction <add>, %66, %cst_53 [0] : vector<32x128xf32> to vector<128xf32>
    %68 = vector.shape_cast %67 : vector<128xf32> to vector<1x128xf32>
    %69 = arith.mulf %64, %64 : vector<1x128xf32>
    %70 = arith.subf %68, %69 : vector<1x128xf32>
    %71 = vector.broadcast %64 : vector<1x128xf32> to vector<32x128xf32>
    %72 = arith.subf %59, %71 : vector<32x128xf32>
    %cst_54 = arith.constant 9.99999974E-6 : f32
    %73 = vector.broadcast %cst_54 : f32 to vector<1x128xf32>
    %74 = arith.addf %70, %73 : vector<1x128xf32>
    %75 = math.rsqrt %74 : vector<1x128xf32>
    %76 = vector.broadcast %75 : vector<1x128xf32> to vector<32x128xf32>
    %77 = arith.mulf %72, %76 : vector<32x128xf32>
    %78 = vector.broadcast %60 : vector<1x128xf32> to vector<32x128xf32>
    %79 = arith.mulf %77, %78 : vector<32x128xf32>
    %80 = vector.broadcast %61 : vector<1x128xf32> to vector<32x128xf32>
    %81 = arith.addf %79, %80 : vector<32x128xf32>
    %c0_55 = arith.constant 0 : index
    %c0_56 = arith.constant 0 : index
    %82 = vector.load %arg13[%c0_55, %c0_56] : memref<64x128xf32, #tpu.memory_space<vmem>>, vector<64x128xf32>
    %cst_57 = arith.constant dense<0.000000e+00> : vector<32x128xf32>
    %83 = tpu.matmul %0, %82, %cst_57 {dimension_numbers = #tpu.dot_dimension_numbers<[1], [0], [0], [1], [0, 0, 1, 1], [], []>} : vector<32x64xf32>, vector<64x128xf32>, vector<32x128xf32> -> vector<32x128xf32>
    %c0_58 = arith.constant 0 : index
    %c0_59 = arith.constant 0 : index
    %84 = vector.load %arg14[%c0_58, %c0_59] : memref<1x128xf32, #tpu.memory_space<vmem>>, vector<1x128xf32>
    %85 = vector.broadcast %84 : vector<1x128xf32> to vector<32x128xf32>
    %86 = arith.addf %83, %85 : vector<32x128xf32>
    %87 = arith.addf %81, %86 : vector<32x128xf32>
    %cst_60 = arith.constant 0.000000e+00 : f32
    %88 = vector.broadcast %cst_60 : f32 to vector<32x128xf32>
    %89 = arith.maximumf %87, %88 : vector<32x128xf32>
    %c0_61 = arith.constant 0 : index
    %c0_62 = arith.constant 0 : index
    %90 = vector.load %arg15[%c0_61, %c0_62] : memref<32x128xf32, #tpu.memory_space<vmem>>, vector<32x128xf32>
    tpu.vector_store %arg15[%c0_61, %c0_62], %89 {strides = array<i32>} : memref<32x128xf32, #tpu.memory_space<vmem>>, vector<32x128xf32>,
    return
  }
  func.func @transform_0(%arg0: i32) -> (i32, i32) {
    %c0_i32 = arith.constant 0 : i32
    %c0_i32_0 = arith.constant 0 : i32
    %c0_i32_1 = arith.constant 0 : i32
    return %c0_i32, %c0_i32_0 : i32, i32
  }
  func.func @transform_1(%arg0: i32) -> (i32, i32) {
    %c0_i32 = arith.constant 0 : i32
    %c0_i32_0 = arith.constant 0 : i32
    %c0_i32_1 = arith.constant 0 : i32
    return %c0_i32, %c0_i32_0 : i32, i32
  }
  func.func @transform_2(%arg0: i32) -> (i32, i32) {
    %c0_i32 = arith.constant 0 : i32
    %c0_i32_0 = arith.constant 0 : i32
    %c0_i32_1 = arith.constant 0 : i32
    return %c0_i32, %c0_i32_0 : i32, i32
  }
  func.func @transform_3(%arg0: i32) -> (i32, i32) {
    %c0_i32 = arith.constant 0 : i32
    %c0_i32_0 = arith.constant 0 : i32
    %c0_i32_1 = arith.constant 0 : i32
    return %c0_i32, %c0_i32_0 : i32, i32
  }
  func.func @transform_4(%arg0: i32) -> (i32, i32, i32) {
    %c0_i32 = arith.constant 0 : i32
    %c0_i32_0 = arith.constant 0 : i32
    %c0_i32_1 = arith.constant 0 : i32
    %c0_i32_2 = arith.constant 0 : i32
    return %c0_i32, %c0_i32_0, %c0_i32_1 : i32, i32, i32
  }
  func.func @transform_5(%arg0: i32) -> (i32, i32) {
    %c0_i32 = arith.constant 0 : i32
    %c0_i32_0 = arith.constant 0 : i32
    %c0_i32_1 = arith.constant 0 : i32
    return %c0_i32, %c0_i32_0 : i32, i32
  }
  func.func @transform_6(%arg0: i32) -> (i32, i32) {
    %c0_i32 = arith.constant 0 : i32
    %c0_i32_0 = arith.constant 0 : i32
    %c0_i32_1 = arith.constant 0 : i32
    return %c0_i32, %c0_i32_0 : i32, i32
  }
  func.func @transform_7(%arg0: i32) -> (i32, i32) {
    %c0_i32 = arith.constant 0 : i32
    %c0_i32_0 = arith.constant 0 : i32
    %c0_i32_1 = arith.constant 0 : i32
    return %c0_i32, %c0_i32_0 : i32, i32
  }
  func.func @transform_8(%arg0: i32) -> (i32, i32, i32) {
    %c0_i32 = arith.constant 0 : i32
    %c0_i32_0 = arith.constant 0 : i32
    %c0_i32_1 = arith.constant 0 : i32
    %c0_i32_2 = arith.constant 0 : i32
    return %c0_i32, %c0_i32_0, %c0_i32_1 : i32, i32, i32
  }
  func.func @transform_9(%arg0: i32) -> (i32, i32) {
    %c0_i32 = arith.constant 0 : i32
    %c0_i32_0 = arith.constant 0 : i32
    %c0_i32_1 = arith.constant 0 : i32
    return %c0_i32, %c0_i32_0 : i32, i32
  }
  func.func @transform_10(%arg0: i32) -> (i32, i32) {
    %c0_i32 = arith.constant 0 : i32
    %c0_i32_0 = arith.constant 0 : i32
    %c0_i32_1 = arith.constant 0 : i32
    return %c0_i32, %c0_i32_0 : i32, i32
  }
  func.func @transform_11(%arg0: i32) -> (i32, i32) {
    %c0_i32 = arith.constant 0 : i32
    %c0_i32_0 = arith.constant 0 : i32
    %c0_i32_1 = arith.constant 0 : i32
    return %c0_i32, %c0_i32_0 : i32, i32
  }
  func.func @transform_12(%arg0: i32) -> (i32, i32) {
    %c0_i32 = arith.constant 0 : i32
    %c0_i32_0 = arith.constant 0 : i32
    %c0_i32_1 = arith.constant 0 : i32
    return %c0_i32, %c0_i32_0 : i32, i32
  }
  func.func @transform_13(%arg0: i32) -> (i32, i32) {
    %c0_i32 = arith.constant 0 : i32
    %c0_i32_0 = arith.constant 0 : i32
    %c0_i32_1 = arith.constant 0 : i32
    return %c0_i32, %c0_i32_0 : i32, i32
  }
  func.func @transform_14(%arg0: i32) -> (i32, i32) {
    %c0_i32 = arith.constant 0 : i32
    %c0_i32_0 = arith.constant 0 : i32
    %c0_i32_1 = arith.constant 0 : i32
    return %c0_i32, %c0_i32_0 : i32, i32
  }
}

</mosaic_0001>

<llo_original>
// kernel: tpu_custom_call.1
$region0: #{tpu_custom_call.1}
  #allocation0 [shape = 'u32[]', space=smem, size = 0x4, offset = 0x4, fixed_abs, tag = 'smem constant byte address 0x4 - core index']
  #allocation1 [shape = 'u32[144,128]{1,0:T(1,128)}', space=vmem, size = 0x12000, scoped, tag = 'internal scratch']
  %s0 = inlined_call_operand.hbm [shape: f32[32,64], index: 0, kind: input, shape index: {}]
  %s1 = inlined_call_operand.hbm [shape: f32[32,32], index: 1, kind: input, shape index: {}]
  %s2 = inlined_call_operand.hbm [shape: f32[32,32], index: 2, kind: input, shape index: {}]
  %s3 = inlined_call_operand.hbm [shape: f32[128,128], index: 3, kind: input, shape index: {}]
  %s4 = inlined_call_operand.hbm [shape: f32[3,64,128], index: 4, kind: input, shape index: {}]
  %s5 = inlined_call_operand.vmem [shape: f32[1,128], index: 5, kind: input, shape index: {}]
  %s6 = inlined_call_operand.vmem [shape: f32[1,128], index: 6, kind: input, shape index: {}]
  %s7 = inlined_call_operand.vmem [shape: f32[1,128], index: 7, kind: input, shape index: {}]
  %s8 = inlined_call_operand.hbm [shape: f32[3,128,128], index: 8, kind: input, shape index: {}]
  %s9 = inlined_call_operand.vmem [shape: f32[1,128], index: 9, kind: input, shape index: {}]
  %s10 = inlined_call_operand.vmem [shape: f32[1,128], index: 10, kind: input, shape index: {}]
  %s11 = inlined_call_operand.vmem [shape: f32[1,128], index: 11, kind: input, shape index: {}]
  %s12 = inlined_call_operand.hbm [shape: f32[64,128], index: 12, kind: input, shape index: {}]
  %s13 = inlined_call_operand.vmem [shape: f32[1,128], index: 13, kind: input, shape index: {}]
  %s14 = inlined_call_operand.hbm [shape: f32[32,128], index: 14, kind: output, shape index: {}]
  %s15 = sld [smem:[#allocation0]]
  $region94: #{tpu_custom_call.1} parent=0
    _
  %s17 = ssub.s32 1, %s15
  %s18 = scalar_select 0, %s17, %s15
  $region1: #{tpu_custom_call.1} parent=0
    #allocation2 [shape = 'u8[16384]{0}', space=vmem, size = 0x4000, scoped, tag = 'input window, operand 0, single buffered']
    #allocation3 [shape = 's32[1]{0}', space=sflag, size = 0x4, scoped, tag = 'scoped memory for tpu_custom_call.1']
    #allocation4 [shape = 's32[1]{0}', space=sflag, size = 0x4, scoped, tag = 'scoped memory for tpu_custom_call.1']
    #allocation5 [shape = 'u8[16384]{0}', space=vmem, size = 0x4000, scoped, tag = 'input window, operand 1, single buffered']
    #allocation6 [shape = 's32[1]{0}', space=sflag, size = 0x4, scoped, tag = 'scoped memory for tpu_custom_call.1']
    #allocation7 [shape = 'u8[16384]{0}', space=vmem, size = 0x4000, scoped, tag = 'input window, operand 2, single buffered']
    #allocation8 [shape = 'u8[65536]{0}', space=vmem, size = 0x10000, scoped, tag = 'input window, operand 3, single buffered']
    #allocation9 [shape = 's32[1]{0}', space=sflag, size = 0x4, scoped, tag = 'scoped memory for tpu_custom_call.1']
    #allocation10 [shape = 'u8[98304]{0}', space=vmem, size = 0x18000, scoped, tag = 'input window, operand 4, single buffered']
    #allocation11 [shape = 'u8[196608]{0}', space=vmem, size = 0x30000, scoped, tag = 'input window, operand 8, single buffered']
    #allocation12 [shape = 's32[1]{0}', space=sflag, size = 0x4, scoped, tag = 'scoped memory for tpu_custom_call.1']
    #allocation13 [shape = 'u8[32768]{0}', space=vmem, size = 0x8000, scoped, tag = 'input window, operand 12, single buffered']
    #allocation14 [shape = 'u8[16384]{0}', space=vmem, size = 0x4000, scoped, tag = 'output window, operand 0, single buffered']
    %19 = vsyncpa [#allocation3], 0
    %20 = vsyncpa [#allocation6], 0
    %21 = vsyncpa [#allocation9], 0
    %22 = vsyncpa [#allocation12], 0
    %23 = vsyncpa [#allocation4], 0
    // Predicated region
    $region2: #{tpu_custom_call.1} parent=1 // pred_check
      _
    $region3: #{tpu_custom_call.1} parent=1 // pred_check_branch
      %25 = sbr.rel (0) target = $region5
    $region4: #{tpu_custom_call.1} parent=1 // pred_region
      %s27 = ssub.s32 512, 512
      %28 = vsyncadd [#allocation3], %s27
      %s29 = sshll.u32 [#allocation2], 4
      %s30 = int_to_ptr.vmem [resolvable:$true] %s29
      %35 = dma.hbm_to_vmem [thread:$0]  %s0, 512, %s30, [#allocation3], 128, 128, 8
    $region5: #{tpu_custom_call.1} parent=1 // pred_fallthru
      _
    // Predicated region
    $region6: #{tpu_custom_call.1} parent=1 // pred_check
      _
    $region7: #{tpu_custom_call.1} parent=1 // pred_check_branch
      %37 = sbr.rel (0) target = $region9
    $region8: #{tpu_custom_call.1} parent=1 // pred_region
      %s39 = ssub.s32 512, 512
      %40 = vsyncadd [#allocation6], %s39
      %s41 = sshll.u32 [#allocation5], 4
      %s42 = int_to_ptr.vmem [resolvable:$true] %s41
      %47 = dma.hbm_to_vmem [thread:$0]  %s1, 512, %s42, [#allocation6], 128, 128, 8
    $region9: #{tpu_custom_call.1} parent=1 // pred_fallthru
      _
    // Predicated region
    $region10: #{tpu_custom_call.1} parent=1 // pred_check
      _
    $region11: #{tpu_custom_call.1} parent=1 // pred_check_branch
      %49 = sbr.rel (0) target = $region13
    $region12: #{tpu_custom_call.1} parent=1 // pred_region
      %s51 = ssub.s32 512, 512
      %52 = vsyncadd [#allocation6], %s51
      %s53 = sshll.u32 [#allocation7], 4
      %s54 = int_to_ptr.vmem [resolvable:$true] %s53
      %59 = dma.hbm_to_vmem [thread:$0]  %s2, 512, %s54, [#allocation6], 128, 128, 8
    $region13: #{tpu_custom_call.1} parent=1 // pred_fallthru
      _
    // Predicated region
    $region14: #{tpu_custom_call.1} parent=1 // pred_check
      _
    $region15: #{tpu_custom_call.1} parent=1 // pred_check_branch
      %61 = sbr.rel (0) target = $region17
    $region16: #{tpu_custom_call.1} parent=1 // pred_region
      %s63 = ssub.s32 2048, 2048
      %64 = vsyncadd [#allocation9], %s63
      %s65 = sshll.u32 [#allocation8], 4
      %s66 = int_to_ptr.vmem [resolvable:$true] %s65
      %71 = dma.hbm_to_vmem [thread:$0]  %s3, 2048, %s66, [#allocation9], 128, 128, 8
    $region17: #{tpu_custom_call.1} parent=1 // pred_fallthru
      _
    // Predicated region
    $region18: #{tpu_custom_call.1} parent=1 // pred_check
      _
    $region19: #{tpu_custom_call.1} parent=1 // pred_check_branch
      %73 = sbr.rel (0) target = $region21
    $region20: #{tpu_custom_call.1} parent=1 // pred_region
      %s75 = ssub.s32 3072, 3072
      %76 = vsyncadd [#allocation9], %s75
      %s77 = sshll.u32 [#allocation10], 4
      %s78 = int_to_ptr.vmem [resolvable:$true] %s77
      %83 = dma.hbm_to_vmem [thread:$0]  %s4, 3072, %s78, [#allocation9], 128, 128, 8
    $region21: #{tpu_custom_call.1} parent=1 // pred_fallthru
      _
    // Predicated region
    $region22: #{tpu_custom_call.1} parent=1 // pred_check
      _
    $region23: #{tpu_custom_call.1} parent=1 // pred_check_branch
      %85 = sbr.rel (0) target = $region25
    $region24: #{tpu_custom_call.1} parent=1 // pred_region
      _
    $region25: #{tpu_custom_call.1} parent=1 // pred_fallthru
      _
    // Predicated region
    $region26: #{tpu_custom_call.1} parent=1 // pred_check
      _
    $region27: #{tpu_custom_call.1} parent=1 // pred_check_branch
      %87 = sbr.rel (0) target = $region29
    $region28: #{tpu_custom_call.1} parent=1 // pred_region
      _
    $region29: #{tpu_custom_call.1} parent=1 // pred_fallthru
      _
    // Predicated region
    $region30: #{tpu_custom_call.1} parent=1 // pred_check
      _
    $region31: #{tpu_custom_call.1} parent=1 // pred_check_branch
      %89 = sbr.rel (0) target = $region33
    $region32: #{tpu_custom_call.1} parent=1 // pred_region
      _
    $region33: #{tpu_custom_call.1} parent=1 // pred_fallthru
      _
    // Predicated region
    $region34: #{tpu_custom_call.1} parent=1 // pred_check
      _
    $region35: #{tpu_custom_call.1} parent=1 // pred_check_branch
      %91 = sbr.rel (0) target = $region37
    $region36: #{tpu_custom_call.1} parent=1 // pred_region
      %s93 = ssub.s32 6144, 6144
      %94 = vsyncadd [#allocation12], %s93
      %s95 = sshll.u32 [#allocation11], 4
      %s96 = int_to_ptr.vmem [resolvable:$true] %s95
      %101 = dma.hbm_to_vmem [thread:$0]  %s8, 6144, %s96, [#allocation12], 128, 128, 8
    $region37: #{tpu_custom_call.1} parent=1 // pred_fallthru
      _
    // Predicated region
    $region38: #{tpu_custom_call.1} parent=1 // pred_check
      _
    $region39: #{tpu_custom_call.1} parent=1 // pred_check_branch
      %103 = sbr.rel (0) target = $region41
    $region40: #{tpu_custom_call.1} parent=1 // pred_region
      _
    $region41: #{tpu_custom_call.1} parent=1 // pred_fallthru
      _
    // Predicated region
    $region42: #{tpu_custom_call.1} parent=1 // pred_check
      _
    $region43: #{tpu_custom_call.1} parent=1 // pred_check_branch
      %105 = sbr.rel (0) target = $region45
    $region44: #{tpu_custom_call.1} parent=1 // pred_region
      _
    $region45: #{tpu_custom_call.1} parent=1 // pred_fallthru
      _
    // Predicated region
    $region46: #{tpu_custom_call.1} parent=1 // pred_check
      _
    $region47: #{tpu_custom_call.1} parent=1 // pred_check_branch
      %107 = sbr.rel (0) target = $region49
    $region48: #{tpu_custom_call.1} parent=1 // pred_region
      _
    $region49: #{tpu_custom_call.1} parent=1 // pred_fallthru
      _
    // Predicated region
    $region50: #{tpu_custom_call.1} parent=1 // pred_check
      _
    $region51: #{tpu_custom_call.1} parent=1 // pred_check_branch
      %109 = sbr.rel (0) target = $region53
    $region52: #{tpu_custom_call.1} parent=1 // pred_region
      %s111 = ssub.s32 1024, 1024
      %112 = vsyncadd [#allocation12], %s111
      %s113 = sshll.u32 [#allocation13], 4
      %s114 = int_to_ptr.vmem [resolvable:$true] %s113
      %119 = dma.hbm_to_vmem [thread:$0]  %s12, 1024, %s114, [#allocation12], 128, 128, 8
    $region53: #{tpu_custom_call.1} parent=1 // pred_fallthru
      _
    // Predicated region
    $region54: #{tpu_custom_call.1} parent=1 // pred_check
      _
    $region55: #{tpu_custom_call.1} parent=1 // pred_check_branch
      %121 = sbr.rel (0) target = $region57
    $region56: #{tpu_custom_call.1} parent=1 // pred_region
      _
    $region57: #{tpu_custom_call.1} parent=1 // pred_fallthru
      _
    // Predicated region
    $region58: #{tpu_custom_call.1} parent=1 // pred_check
      _
    $region59: #{tpu_custom_call.1} parent=1 // pred_check_branch
      %123 = sbr.rel (0) target = $region61
    $region60: #{tpu_custom_call.1} parent=1 // pred_region
      %124 = dma.done [#allocation3], 512
    $region61: #{tpu_custom_call.1} parent=1 // pred_fallthru
      _
    // Predicated region
    $region62: #{tpu_custom_call.1} parent=1 // pred_check
      _
    $region63: #{tpu_custom_call.1} parent=1 // pred_check_branch
      %126 = sbr.rel (0) target = $region65
    $region64: #{tpu_custom_call.1} parent=1 // pred_region
      %127 = dma.done [#allocation6], 512
    $region65: #{tpu_custom_call.1} parent=1 // pred_fallthru
      _
    // Predicated region
    $region66: #{tpu_custom_call.1} parent=1 // pred_check
      _
    $region67: #{tpu_custom_call.1} parent=1 // pred_check_branch
      %129 = sbr.rel (0) target = $region69
    $region68: #{tpu_custom_call.1} parent=1 // pred_region
      %130 = dma.done [#allocation6], 512
    $region69: #{tpu_custom_call.1} parent=1 // pred_fallthru
      _
    // Predicated region
    $region70: #{tpu_custom_call.1} parent=1 // pred_check
      _
    $region71: #{tpu_custom_call.1} parent=1 // pred_check_branch
      %132 = sbr.rel (0) target = $region73
    $region72: #{tpu_custom_call.1} parent=1 // pred_region
      %133 = dma.done [#allocation9], 2048
    $region73: #{tpu_custom_call.1} parent=1 // pred_fallthru
      _
    // Predicated region
    $region74: #{tpu_custom_call.1} parent=1 // pred_check
      _
    $region75: #{tpu_custom_call.1} parent=1 // pred_check_branch
      %135 = sbr.rel (0) target = $region77
    $region76: #{tpu_custom_call.1} parent=1 // pred_region
      %136 = dma.done [#allocation9], 3072
    $region77: #{tpu_custom_call.1} parent=1 // pred_fallthru
      _
    // Predicated region
    $region78: #{tpu_custom_call.1} parent=1 // pred_check
      _
    $region79: #{tpu_custom_call.1} parent=1 // pred_check_branch
      %138 = sbr.rel (0) target = $region81
    $region80: #{tpu_custom_call.1} parent=1 // pred_region
      %139 = dma.done [#allocation12], 6144
    $region81: #{tpu_custom_call.1} parent=1 // pred_fallthru
      _
    // Predicated region
    $region82: #{tpu_custom_call.1} parent=1 // pred_check
      _
    $region83: #{tpu_custom_call.1} parent=1 // pred_check_branch
      %141 = sbr.rel (0) target = $region85
    $region84: #{tpu_custom_call.1} parent=1 // pred_region
      %142 = dma.done [#allocation12], 1024
    $region85: #{tpu_custom_call.1} parent=1 // pred_fallthru
      _
    %v143 = vld [vmem:[#allocation2] sm:$0xff]
    %v144 = vld [vmem:[#allocation2 + $0x8] sm:$0xff]
    %v145 = vld [vmem:[#allocation2 + $0x10] sm:$0xff]
    %v146 = vld [vmem:[#allocation2 + $0x18] sm:$0xff]
    %v147 = vld [vmem:[#allocation5] sm:$0xff]
    %v148 = vld [vmem:[#allocation5 + $0x8] sm:$0xff]
    %v149 = vld [vmem:[#allocation5 + $0x10] sm:$0xff]
    %v150 = vld [vmem:[#allocation5 + $0x18] sm:$0xff]
    %v151 = vld [vmem:[#allocation7] sm:$0xff]
    %v152 = vld [vmem:[#allocation7 + $0x8] sm:$0xff]
    %v153 = vld [vmem:[#allocation7 + $0x10] sm:$0xff]
    %v154 = vld [vmem:[#allocation7 + $0x18] sm:$0xff]
    %v155 = vld [vmem:[#allocation8] sm:$0xff]
    %v156 = vld [vmem:[#allocation8 + $0x8] sm:$0xff]
    %v157 = vld [vmem:[#allocation8 + $0x10] sm:$0xff]
    %v158 = vld [vmem:[#allocation8 + $0x18] sm:$0xff]
    %v159 = vld [vmem:[#allocation8 + $0x20] sm:$0xff]
    %v160 = vld [vmem:[#allocation8 + $0x28] sm:$0xff]
    %v161 = vld [vmem:[#allocation8 + $0x30] sm:$0xff]
    %v162 = vld [vmem:[#allocation8 + $0x38] sm:$0xff]
    %v163 = vld [vmem:[#allocation8 + $0x40] sm:$0xff]
    %v164 = vld [vmem:[#allocation8 + $0x48] sm:$0xff]
    %v165 = vld [vmem:[#allocation8 + $0x50] sm:$0xff]
    %v166 = vld [vmem:[#allocation8 + $0x58] sm:$0xff]
    %v167 = vld [vmem:[#allocation8 + $0x60] sm:$0xff]
    %v168 = vld [vmem:[#allocation8 + $0x68] sm:$0xff]
    %v169 = vld [vmem:[#allocation8 + $0x70] sm:$0xff]
    %v170 = vld [vmem:[#allocation8 + $0x78] sm:$0xff]
    %v171 = vld [vmem:[#allocation10] sm:$0xff]
    %v172 = vld [vmem:[#allocation10 + $0x8] sm:$0xff]
    %v173 = vld [vmem:[#allocation10 + $0x10] sm:$0xff]
    %v174 = vld [vmem:[#allocation10 + $0x18] sm:$0xff]
    %v175 = vld [vmem:[#allocation10 + $0x20] sm:$0xff]
    %v176 = vld [vmem:[#allocation10 + $0x28] sm:$0xff]
    %v177 = vld [vmem:[#allocation10 + $0x30] sm:$0xff]
    %v178 = vld [vmem:[#allocation10 + $0x38] sm:$0xff]
    %vm179 = vcmask 523264
    %v181 = vsel %vm179, %v143, 0
    %v184 = vsel %vm179, %v144, 0
    %v187 = vsel %vm179, %v145, 0
    %v190 = vsel %vm179, %v146, 0
    %192 = vmatprep.subr.mxu0 0.0
    %193 = vmatpush1.msra.mxu0 0.0
    %194 = vmatprep.subr.mxu0 0.0
    %195 = vmatpush1.msra.mxu0 0.0
    %196 = vmatprep.subr.mxu0 0.0
    %197 = vmatpush1.msra.mxu0 0.0
    %198 = vmatprep.subr.mxu0 0.0
    %199 = vmatpush1.msra.mxu0 0.0
    %200 = vmatprep.subr.mxu0 0.0
    %201 = vmatpush1.msra.mxu0 0.0
    %202 = vmatprep.subr.mxu0 0.0
    %203 = vmatpush1.msra.mxu0 0.0
    %204 = vmatprep.subr.mxu0 0.0
    %205 = vmatpush1.msra.mxu0 0.0
    %206 = vmatprep.subr.mxu0 0.0
    %207 = vmatpush1.msra.mxu0 0.0
    %208 = vmatprep.subr.mxu0 0.0
    %209 = vmatpush1.msra.mxu0 %v178
    %210 = vmatprep.subr.mxu0 0.0
    %211 = vmatpush1.msra.mxu0 %v177
    %212 = vmatprep.subr.mxu0 0.0
    %213 = vmatpush1.msra.mxu0 %v176
    %214 = vmatprep.subr.mxu0 0.0
    %215 = vmatpush1.msra.mxu0 %v175
    %216 = vmatprep.subr.mxu0 0.0
    %217 = vmatpush1.msra.mxu0 %v174
    %218 = vmatprep.subr.mxu0 0.0
    %219 = vmatpush1.msra.mxu0 %v173
    %220 = vmatprep.subr.mxu0 0.0
    %221 = vmatpush1.msra.mxu0 %v172
    %222 = vmatprep.subr.mxu0 0.0
    %223 = vmatpush1.msra.mxu0 %v171
    %224 = vmatprep.subr.mxu0 0.0
    %225 = vmatpush2.msra.mxu0 0.0
    %226 = vmatprep.subr.mxu0 0.0
    %227 = vmatpush2.msra.mxu0 0.0
    %228 = vmatprep.subr.mxu0 0.0
    %229 = vmatpush2.msra.mxu0 0.0
    %230 = vmatprep.subr.mxu0 0.0
    %231 = vmatpush2.msra.mxu0 0.0
    %232 = vmatprep.subr.mxu0 0.0
    %233 = vmatpush2.msra.mxu0 0.0
    %234 = vmatprep.subr.mxu0 0.0
    %235 = vmatpush2.msra.mxu0 0.0
    %236 = vmatprep.subr.mxu0 0.0
    %237 = vmatpush2.msra.mxu0 0.0
    %238 = vmatprep.subr.mxu0 0.0
    %239 = vmatpush2.msra.mxu0 0.0
    %240 = vmatprep.subr.mxu0 0.0
    %241 = vmatpush2.msra.mxu0 0.0
    %242 = vmatprep.subr.mxu0 0.0
    %243 = vmatpush2.msra.mxu0 0.0
    %244 = vmatprep.subr.mxu0 0.0
    %245 = vmatpush2.msra.mxu0 0.0
    %246 = vmatprep.subr.mxu0 0.0
    %247 = vmatpush2.msra.mxu0 0.0
    %248 = vmatprep.subr.mxu0 0.0
    %249 = vmatpush2.msra.mxu0 0.0
    %250 = vmatprep.subr.mxu0 0.0
    %251 = vmatpush2.msra.mxu0 0.0
    %252 = vmatprep.subr.mxu0 0.0
    %253 = vmatpush2.msra.mxu0 0.0
    %254 = vmatprep.subr.mxu0 0.0
    %255 = vmatpush2.msra.mxu0 0.0
    %256 = vmatprep.mubr.f32.mxu0 0.0
    %257 = vmatmul.mubr.f32.gmra.mxu0 %v181
    %v258 = vpop.f32.mrf.mxu0
    %v259 = vadd.f32 0.0, %v258
    %v260 = vpop.f32.mrf.mxu0
    %261 = vmatprep.mubr.f32.mxu0 0.0
    %262 = vmatmul.mubr.f32.gmra.mxu0 %v184
    %v263 = vpop.f32.mrf.mxu0
    %v264 = vadd.f32 0.0, %v263
    %v265 = vpop.f32.mrf.mxu0
    %266 = vmatprep.mubr.f32.mxu0 0.0
    %267 = vmatmul.mubr.f32.gmra.mxu0 %v187
    %v268 = vpop.f32.mrf.mxu0
    %v269 = vadd.f32 0.0, %v268
    %v270 = vpop.f32.mrf.mxu0
    %271 = vmatprep.mubr.f32.mxu0 0.0
    %272 = vmatmul.mubr.f32.gmra.mxu0 %v190
    %v273 = vpop.f32.mrf.mxu0
    %v274 = vadd.f32 0.0, %v273
    %v275 = vpop.f32.mrf.mxu0
    %276 = vdwg.mxu0
    %s277 = scalar_lea.vmem [#allocation10], 64
    %v278 = vld [vmem:[%s277] sm:$0xff]
    %v279 = vld [vmem:[%s277 + $0x8] sm:$0xff]
    %v280 = vld [vmem:[%s277 + $0x10] sm:$0xff]
    %v281 = vld [vmem:[%s277 + $0x18] sm:$0xff]
    %v282 = vld [vmem:[%s277 + $0x20] sm:$0xff]
    %v283 = vld [vmem:[%s277 + $0x28] sm:$0xff]
    %v284 = vld [vmem:[%s277 + $0x30] sm:$0xff]
    %v285 = vld [vmem:[%s277 + $0x38] sm:$0xff]
    %s286 = scalar_lea.vmem [#allocation10], 128
    %v287 = vld [vmem:[%s286] sm:$0xff]
    %v288 = vld [vmem:[%s286 + $0x8] sm:$0xff]
    %v289 = vld [vmem:[%s286 + $0x10] sm:$0xff]
    %v290 = vld [vmem:[%s286 + $0x18] sm:$0xff]
    %v291 = vld [vmem:[%s286 + $0x20] sm:$0xff]
    %v292 = vld [vmem:[%s286 + $0x28] sm:$0xff]
    %v293 = vld [vmem:[%s286 + $0x30] sm:$0xff]
    %v294 = vld [vmem:[%s286 + $0x38] sm:$0xff]
    %295 = vmatprep.subr.mxu0 0.0
    %296 = vmatpush1.msra.mxu0 0.0
    %297 = vmatprep.subr.mxu0 0.0
    %298 = vmatpush1.msra.mxu0 0.0
    %299 = vmatprep.subr.mxu0 0.0
    %300 = vmatpush1.msra.mxu0 0.0
    %301 = vmatprep.subr.mxu0 0.0
    %302 = vmatpush1.msra.mxu0 0.0
    %303 = vmatprep.subr.mxu0 0.0
    %304 = vmatpush1.msra.mxu0 0.0
    %305 = vmatprep.subr.mxu0 0.0
    %306 = vmatpush1.msra.mxu0 0.0
    %307 = vmatprep.subr.mxu0 0.0
    %308 = vmatpush1.msra.mxu0 0.0
    %309 = vmatprep.subr.mxu0 0.0
    %310 = vmatpush1.msra.mxu0 0.0
    %311 = vmatprep.subr.mxu0 0.0
    %312 = vmatpush1.msra.mxu0 %v294
    %313 = vmatprep.subr.mxu0 0.0
    %314 = vmatpush1.msra.mxu0 %v293
    %315 = vmatprep.subr.mxu0 0.0
    %316 = vmatpush1.msra.mxu0 %v292
    %317 = vmatprep.subr.mxu0 0.0
    %318 = vmatpush1.msra.mxu0 %v291
    %319 = vmatprep.subr.mxu0 0.0
    %320 = vmatpush1.msra.mxu0 %v290
    %321 = vmatprep.subr.mxu0 0.0
    %322 = vmatpush1.msra.mxu0 %v289
    %323 = vmatprep.subr.mxu0 0.0
    %324 = vmatpush1.msra.mxu0 %v288
    %325 = vmatprep.subr.mxu0 0.0
    %326 = vmatpush1.msra.mxu0 %v287
    %327 = vmatprep.subr.mxu0 0.0
    %328 = vmatpush2.msra.mxu0 0.0
    %329 = vmatprep.subr.mxu0 0.0
    %330 = vmatpush2.msra.mxu0 0.0
    %331 = vmatprep.subr.mxu0 0.0
    %332 = vmatpush2.msra.mxu0 0.0
    %333 = vmatprep.subr.mxu0 0.0
    %334 = vmatpush2.msra.mxu0 0.0
    %335 = vmatprep.subr.mxu0 0.0
    %336 = vmatpush2.msra.mxu0 0.0
    %337 = vmatprep.subr.mxu0 0.0
    %338 = vmatpush2.msra.mxu0 0.0
    %339 = vmatprep.subr.mxu0 0.0
    %340 = vmatpush2.msra.mxu0 0.0
    %341 = vmatprep.subr.mxu0 0.0
    %342 = vmatpush2.msra.mxu0 0.0
    %343 = vmatprep.subr.mxu0 0.0
    %344 = vmatpush2.msra.mxu0 0.0
    %345 = vmatprep.subr.mxu0 0.0
    %346 = vmatpush2.msra.mxu0 0.0
    %347 = vmatprep.subr.mxu0 0.0
    %348 = vmatpush2.msra.mxu0 0.0
    %349 = vmatprep.subr.mxu0 0.0
    %350 = vmatpush2.msra.mxu0 0.0
    %351 = vmatprep.subr.mxu0 0.0
    %352 = vmatpush2.msra.mxu0 0.0
    %353 = vmatprep.subr.mxu0 0.0
    %354 = vmatpush2.msra.mxu0 0.0
    %355 = vmatprep.subr.mxu0 0.0
    %356 = vmatpush2.msra.mxu0 0.0
    %357 = vmatprep.subr.mxu0 0.0
    %358 = vmatpush2.msra.mxu0 0.0
    %359 = vmatprep.mubr.f32.mxu0 0.0
    %360 = vmatmul.mubr.f32.gmra.mxu0 %v181
    %v361 = vpop.f32.mrf.mxu0
    %v362 = vadd.f32 0.0, %v361
    %v363 = vpop.f32.mrf.mxu0
    %364 = vmatprep.mubr.f32.mxu0 0.0
    %365 = vmatmul.mubr.f32.gmra.mxu0 %v184
    %v366 = vpop.f32.mrf.mxu0
    %v367 = vadd.f32 0.0, %v366
    %v368 = vpop.f32.mrf.mxu0
    %369 = vmatprep.mubr.f32.mxu0 0.0
    %370 = vmatmul.mubr.f32.gmra.mxu0 %v187
    %v371 = vpop.f32.mrf.mxu0
    %v372 = vadd.f32 0.0, %v371
    %v373 = vpop.f32.mrf.mxu0
    %374 = vmatprep.mubr.f32.mxu0 0.0
    %375 = vmatmul.mubr.f32.gmra.mxu0 %v190
    %v376 = vpop.f32.mrf.mxu0
    %v377 = vadd.f32 0.0, %v376
    %v378 = vpop.f32.mrf.mxu0
    %379 = vdwg.mxu0
    %vm380 = vcmask 261120
    %v382 = vsel %vm380, %v147, 0
    %v385 = vsel %vm380, %v148, 0
    %v388 = vsel %vm380, %v149, 0
    %v391 = vsel %vm380, %v150, 0
    %393 = vmatprep.subr.mxu0 0.0
    %394 = vmatpush1.msra.mxu0 0.0
    %395 = vmatprep.subr.mxu0 0.0
    %396 = vmatpush1.msra.mxu0 0.0
    %397 = vmatprep.subr.mxu0 0.0
    %398 = vmatpush1.msra.mxu0 0.0
    %399 = vmatprep.subr.mxu0 0.0
    %400 = vmatpush1.msra.mxu0 0.0
    %401 = vmatprep.subr.mxu0 0.0
    %402 = vmatpush1.msra.mxu0 0.0
    %403 = vmatprep.subr.mxu0 0.0
    %404 = vmatpush1.msra.mxu0 0.0
    %405 = vmatprep.subr.mxu0 0.0
    %406 = vmatpush1.msra.mxu0 0.0
    %407 = vmatprep.subr.mxu0 0.0
    %408 = vmatpush1.msra.mxu0 0.0
    %409 = vmatprep.subr.mxu0 0.0
    %410 = vmatpush1.msra.mxu0 0.0
    %411 = vmatprep.subr.mxu0 0.0
    %412 = vmatpush1.msra.mxu0 0.0
    %413 = vmatprep.subr.mxu0 0.0
    %414 = vmatpush1.msra.mxu0 0.0
    %415 = vmatprep.subr.mxu0 0.0
    %416 = vmatpush1.msra.mxu0 0.0
    %417 = vmatprep.subr.mxu0 0.0
    %418 = vmatpush1.msra.mxu0 %v274
    %419 = vmatprep.subr.mxu0 0.0
    %420 = vmatpush1.msra.mxu0 %v269
    %421 = vmatprep.subr.mxu0 0.0
    %422 = vmatpush1.msra.mxu0 %v264
    %423 = vmatprep.subr.mxu0 0.0
    %424 = vmatpush1.msra.mxu0 %v259
    %425 = vmatprep.subr.mxu0 0.0
    %426 = vmatpush2.msra.mxu0 0.0
    %427 = vmatprep.subr.mxu0 0.0
    %428 = vmatpush2.msra.mxu0 0.0
    %429 = vmatprep.subr.mxu0 0.0
    %430 = vmatpush2.msra.mxu0 0.0
    %431 = vmatprep.subr.mxu0 0.0
    %432 = vmatpush2.msra.mxu0 0.0
    %433 = vmatprep.subr.mxu0 0.0
    %434 = vmatpush2.msra.mxu0 0.0
    %435 = vmatprep.subr.mxu0 0.0
    %436 = vmatpush2.msra.mxu0 0.0
    %437 = vmatprep.subr.mxu0 0.0
    %438 = vmatpush2.msra.mxu0 0.0
    %439 = vmatprep.subr.mxu0 0.0
    %440 = vmatpush2.msra.mxu0 0.0
    %441 = vmatprep.subr.mxu0 0.0
    %442 = vmatpush2.msra.mxu0 0.0
    %443 = vmatprep.subr.mxu0 0.0
    %444 = vmatpush2.msra.mxu0 0.0
    %445 = vmatprep.subr.mxu0 0.0
    %446 = vmatpush2.msra.mxu0 0.0
    %447 = vmatprep.subr.mxu0 0.0
    %448 = vmatpush2.msra.mxu0 0.0
    %449 = vmatprep.subr.mxu0 0.0
    %450 = vmatpush2.msra.mxu0 0.0
    %451 = vmatprep.subr.mxu0 0.0
    %452 = vmatpush2.msra.mxu0 0.0
    %453 = vmatprep.subr.mxu0 0.0
    %454 = vmatpush2.msra.mxu0 0.0
    %455 = vmatprep.subr.mxu0 0.0
    %456 = vmatpush2.msra.mxu0 0.0
    %457 = vmatprep.mubr.f32.mxu0 0.0
    %458 = vmatmul.mubr.f32.gmra.mxu0 %v382
    %v459 = vpop.f32.mrf.mxu0
    %v460 = vadd.f32 0.0, %v459
    %v461 = vpop.f32.mrf.mxu0
    %462 = vmatprep.mubr.f32.mxu0 0.0
    %463 = vmatmul.mubr.f32.gmra.mxu0 %v385
    %v464 = vpop.f32.mrf.mxu0
    %v465 = vadd.f32 0.0, %v464
    %v466 = vpop.f32.mrf.mxu0
    %467 = vmatprep.mubr.f32.mxu0 0.0
    %468 = vmatmul.mubr.f32.gmra.mxu0 %v388
    %v469 = vpop.f32.mrf.mxu0
    %v470 = vadd.f32 0.0, %v469
    %v471 = vpop.f32.mrf.mxu0
    %472 = vmatprep.mubr.f32.mxu0 0.0
    %473 = vmatmul.mubr.f32.gmra.mxu0 %v391
    %v474 = vpop.f32.mrf.mxu0
    %v475 = vadd.f32 0.0, %v474
    %v476 = vpop.f32.mrf.mxu0
    %477 = vdwg.mxu0
    %478 = vmatprep.subr.mxu0 0.0
    %479 = vmatpush1.msra.mxu0 0.0
    %480 = vmatprep.subr.mxu0 0.0
    %481 = vmatpush1.msra.mxu0 0.0
    %482 = vmatprep.subr.mxu0 0.0
    %483 = vmatpush1.msra.mxu0 0.0
    %484 = vmatprep.subr.mxu0 0.0
    %485 = vmatpush1.msra.mxu0 0.0
    %486 = vmatprep.subr.mxu0 0.0
    %487 = vmatpush1.msra.mxu0 0.0
    %488 = vmatprep.subr.mxu0 0.0
    %489 = vmatpush1.msra.mxu0 0.0
    %490 = vmatprep.subr.mxu0 0.0
    %491 = vmatpush1.msra.mxu0 0.0
    %492 = vmatprep.subr.mxu0 0.0
    %493 = vmatpush1.msra.mxu0 0.0
    %494 = vmatprep.subr.mxu0 0.0
    %495 = vmatpush1.msra.mxu0 %v285
    %496 = vmatprep.subr.mxu0 0.0
    %497 = vmatpush1.msra.mxu0 %v284
    %498 = vmatprep.subr.mxu0 0.0
    %499 = vmatpush1.msra.mxu0 %v283
    %500 = vmatprep.subr.mxu0 0.0
    %501 = vmatpush1.msra.mxu0 %v282
    %502 = vmatprep.subr.mxu0 0.0
    %503 = vmatpush1.msra.mxu0 %v281
    %504 = vmatprep.subr.mxu0 0.0
    %505 = vmatpush1.msra.mxu0 %v280
    %506 = vmatprep.subr.mxu0 0.0
    %507 = vmatpush1.msra.mxu0 %v279
    %508 = vmatprep.subr.mxu0 0.0
    %509 = vmatpush1.msra.mxu0 %v278
    %510 = vmatprep.subr.mxu0 0.0
    %511 = vmatpush2.msra.mxu0 0.0
    %512 = vmatprep.subr.mxu0 0.0
    %513 = vmatpush2.msra.mxu0 0.0
    %514 = vmatprep.subr.mxu0 0.0
    %515 = vmatpush2.msra.mxu0 0.0
    %516 = vmatprep.subr.mxu0 0.0
    %517 = vmatpush2.msra.mxu0 0.0
    %518 = vmatprep.subr.mxu0 0.0
    %519 = vmatpush2.msra.mxu0 0.0
    %520 = vmatprep.subr.mxu0 0.0
    %521 = vmatpush2.msra.mxu0 0.0
    %522 = vmatprep.subr.mxu0 0.0
    %523 = vmatpush2.msra.mxu0 0.0
    %524 = vmatprep.subr.mxu0 0.0
    %525 = vmatpush2.msra.mxu0 0.0
    %526 = vmatprep.subr.mxu0 0.0
    %527 = vmatpush2.msra.mxu0 0.0
    %528 = vmatprep.subr.mxu0 0.0
    %529 = vmatpush2.msra.mxu0 0.0
    %530 = vmatprep.subr.mxu0 0.0
    %531 = vmatpush2.msra.mxu0 0.0
    %532 = vmatprep.subr.mxu0 0.0
    %533 = vmatpush2.msra.mxu0 0.0
    %534 = vmatprep.subr.mxu0 0.0
    %535 = vmatpush2.msra.mxu0 0.0
    %536 = vmatprep.subr.mxu0 0.0
    %537 = vmatpush2.msra.mxu0 0.0
    %538 = vmatprep.subr.mxu0 0.0
    %539 = vmatpush2.msra.mxu0 0.0
    %540 = vmatprep.subr.mxu0 0.0
    %541 = vmatpush2.msra.mxu0 0.0
    %542 = vmatprep.mubr.f32.mxu0 0.0
    %543 = vmatmul.mubr.f32.gmra.mxu0 %v181
    %v544 = vpop.f32.mrf.mxu0
    %v545 = vadd.f32 %v460, %v544
    %v546 = vpop.f32.mrf.mxu0
    %547 = vmatprep.mubr.f32.mxu0 0.0
    %548 = vmatmul.mubr.f32.gmra.mxu0 %v184
    %v549 = vpop.f32.mrf.mxu0
    %v550 = vadd.f32 %v465, %v549
    %v551 = vpop.f32.mrf.mxu0
    %552 = vmatprep.mubr.f32.mxu0 0.0
    %553 = vmatmul.mubr.f32.gmra.mxu0 %v187
    %v554 = vpop.f32.mrf.mxu0
    %v555 = vadd.f32 %v470, %v554
    %v556 = vpop.f32.mrf.mxu0
    %557 = vmatprep.mubr.f32.mxu0 0.0
    %558 = vmatmul.mubr.f32.gmra.mxu0 %v190
    %v559 = vpop.f32.mrf.mxu0
    %v560 = vadd.f32 %v475, %v559
    %v561 = vpop.f32.mrf.mxu0
    %562 = vdwg.mxu0
    %v564 = vsel %vm380, %v151, 0
    %v567 = vsel %vm380, %v152, 0
    %v570 = vsel %vm380, %v153, 0
    %v573 = vsel %vm380, %v154, 0
    %575 = vmatprep.subr.mxu0 0.0
    %576 = vmatpush1.msra.mxu0 0.0
    %577 = vmatprep.subr.mxu0 0.0
    %578 = vmatpush1.msra.mxu0 0.0
    %579 = vmatprep.subr.mxu0 0.0
    %580 = vmatpush1.msra.mxu0 0.0
    %581 = vmatprep.subr.mxu0 0.0
    %582 = vmatpush1.msra.mxu0 0.0
    %583 = vmatprep.subr.mxu0 0.0
    %584 = vmatpush1.msra.mxu0 0.0
    %585 = vmatprep.subr.mxu0 0.0
    %586 = vmatpush1.msra.mxu0 0.0
    %587 = vmatprep.subr.mxu0 0.0
    %588 = vmatpush1.msra.mxu0 0.0
    %589 = vmatprep.subr.mxu0 0.0
    %590 = vmatpush1.msra.mxu0 0.0
    %591 = vmatprep.subr.mxu0 0.0
    %592 = vmatpush1.msra.mxu0 0.0
    %593 = vmatprep.subr.mxu0 0.0
    %594 = vmatpush1.msra.mxu0 0.0
    %595 = vmatprep.subr.mxu0 0.0
    %596 = vmatpush1.msra.mxu0 0.0
    %597 = vmatprep.subr.mxu0 0.0
    %598 = vmatpush1.msra.mxu0 0.0
    %599 = vmatprep.subr.mxu0 0.0
    %600 = vmatpush1.msra.mxu0 %v377
    %601 = vmatprep.subr.mxu0 0.0
    %602 = vmatpush1.msra.mxu0 %v372
    %603 = vmatprep.subr.mxu0 0.0
    %604 = vmatpush1.msra.mxu0 %v367
    %605 = vmatprep.subr.mxu0 0.0
    %606 = vmatpush1.msra.mxu0 %v362
    %607 = vmatprep.subr.mxu0 0.0
    %608 = vmatpush2.msra.mxu0 0.0
    %609 = vmatprep.subr.mxu0 0.0
    %610 = vmatpush2.msra.mxu0 0.0
    %611 = vmatprep.subr.mxu0 0.0
    %612 = vmatpush2.msra.mxu0 0.0
    %613 = vmatprep.subr.mxu0 0.0
    %614 = vmatpush2.msra.mxu0 0.0
    %615 = vmatprep.subr.mxu0 0.0
    %616 = vmatpush2.msra.mxu0 0.0
    %617 = vmatprep.subr.mxu0 0.0
    %618 = vmatpush2.msra.mxu0 0.0
    %619 = vmatprep.subr.mxu0 0.0
    %620 = vmatpush2.msra.mxu0 0.0
    %621 = vmatprep.subr.mxu0 0.0
    %622 = vmatpush2.msra.mxu0 0.0
    %623 = vmatprep.subr.mxu0 0.0
    %624 = vmatpush2.msra.mxu0 0.0
    %625 = vmatprep.subr.mxu0 0.0
    %626 = vmatpush2.msra.mxu0 0.0
    %627 = vmatprep.subr.mxu0 0.0
    %628 = vmatpush2.msra.mxu0 0.0
    %629 = vmatprep.subr.mxu0 0.0
    %630 = vmatpush2.msra.mxu0 0.0
    %631 = vmatprep.subr.mxu0 0.0
    %632 = vmatpush2.msra.mxu0 0.0
    %633 = vmatprep.subr.mxu0 0.0
    %634 = vmatpush2.msra.mxu0 0.0
    %635 = vmatprep.subr.mxu0 0.0
    %636 = vmatpush2.msra.mxu0 0.0
    %637 = vmatprep.subr.mxu0 0.0
    %638 = vmatpush2.msra.mxu0 0.0
    %639 = vmatprep.mubr.f32.mxu0 0.0
    %640 = vmatmul.mubr.f32.gmra.mxu0 %v564
    %v641 = vpop.f32.mrf.mxu0
    %v642 = vadd.f32 0.0, %v641
    %v643 = vpop.f32.mrf.mxu0
    %644 = vmatprep.mubr.f32.mxu0 0.0
    %645 = vmatmul.mubr.f32.gmra.mxu0 %v567
    %v646 = vpop.f32.mrf.mxu0
    %v647 = vadd.f32 0.0, %v646
    %v648 = vpop.f32.mrf.mxu0
    %649 = vmatprep.mubr.f32.mxu0 0.0
    %650 = vmatmul.mubr.f32.gmra.mxu0 %v570
    %v651 = vpop.f32.mrf.mxu0
    %v652 = vadd.f32 0.0, %v651
    %v653 = vpop.f32.mrf.mxu0
    %654 = vmatprep.mubr.f32.mxu0 0.0
    %655 = vmatmul.mubr.f32.gmra.mxu0 %v573
    %v656 = vpop.f32.mrf.mxu0
    %v657 = vadd.f32 0.0, %v656
    %v658 = vpop.f32.mrf.mxu0
    %659 = vdwg.mxu0
    %v660 = vadd.f32 %v545, %v642
    %v661 = vadd.f32 %v550, %v647
    %v662 = vadd.f32 %v555, %v652
    %v663 = vadd.f32 %v560, %v657
    %v664 = vld [vmem:[%s5] sm:$0x1]
    %v666 = vlaneseq
    %v667 = vshrl.u32 %v666, 7
    %v668 = vsub.s32 0, %v667
    %v669 = vrot.slane %v664, %v668
    %v671 = vadd.f32 %v660, %v669
    %v672 = vadd.f32 %v661, %v669
    %v673 = vadd.f32 %v662, %v669
    %v674 = vadd.f32 %v663, %v669
    %v675 = vld [vmem:[%s6] sm:$0x1]
    %v676 = vld [vmem:[%s7] sm:$0x1]
    %677 = vmatprep.subr.mxu0 0.0
    %678 = vmatpush1.msra.mxu0 %v170
    %679 = vmatprep.subr.mxu0 0.0
    %680 = vmatpush1.msra.mxu0 %v169
    %681 = vmatprep.subr.mxu0 0.0
    %682 = vmatpush1.msra.mxu0 %v168
    %683 = vmatprep.subr.mxu0 0.0
    %684 = vmatpush1.msra.mxu0 %v167
    %685 = vmatprep.subr.mxu0 0.0
    %686 = vmatpush1.msra.mxu0 %v166
    %687 = vmatprep.subr.mxu0 0.0
    %688 = vmatpush1.msra.mxu0 %v165
    %689 = vmatprep.subr.mxu0 0.0
    %690 = vmatpush1.msra.mxu0 %v164
    %691 = vmatprep.subr.mxu0 0.0
    %692 = vmatpush1.msra.mxu0 %v163
    %693 = vmatprep.subr.mxu0 0.0
    %694 = vmatpush1.msra.mxu0 %v162
    %695 = vmatprep.subr.mxu0 0.0
    %696 = vmatpush1.msra.mxu0 %v161
    %697 = vmatprep.subr.mxu0 0.0
    %698 = vmatpush1.msra.mxu0 %v160
    %699 = vmatprep.subr.mxu0 0.0
    %700 = vmatpush1.msra.mxu0 %v159
    %701 = vmatprep.subr.mxu0 0.0
    %702 = vmatpush1.msra.mxu0 %v158
    %703 = vmatprep.subr.mxu0 0.0
    %704 = vmatpush1.msra.mxu0 %v157
    %705 = vmatprep.subr.mxu0 0.0
    %706 = vmatpush1.msra.mxu0 %v156
    %707 = vmatprep.subr.mxu0 0.0
    %708 = vmatpush1.msra.mxu0 %v155
    %709 = vmatprep.subr.mxu0 0.0
    %710 = vmatpush2.msra.mxu0 0.0
    %711 = vmatprep.subr.mxu0 0.0
    %712 = vmatpush2.msra.mxu0 0.0
    %713 = vmatprep.subr.mxu0 0.0
    %714 = vmatpush2.msra.mxu0 0.0
    %715 = vmatprep.subr.mxu0 0.0
    %716 = vmatpush2.msra.mxu0 0.0
    %717 = vmatprep.subr.mxu0 0.0
    %718 = vmatpush2.msra.mxu0 0.0
    %719 = vmatprep.subr.mxu0 0.0
    %720 = vmatpush2.msra.mxu0 0.0
    %721 = vmatprep.subr.mxu0 0.0
    %722 = vmatpush2.msra.mxu0 0.0
    %723 = vmatprep.subr.mxu0 0.0
    %724 = vmatpush2.msra.mxu0 0.0
    %725 = vmatprep.subr.mxu0 0.0
    %726 = vmatpush2.msra.mxu0 0.0
    %727 = vmatprep.subr.mxu0 0.0
    %728 = vmatpush2.msra.mxu0 0.0
    %729 = vmatprep.subr.mxu0 0.0
    %730 = vmatpush2.msra.mxu0 0.0
    %731 = vmatprep.subr.mxu0 0.0
    %732 = vmatpush2.msra.mxu0 0.0
    %733 = vmatprep.subr.mxu0 0.0
    %734 = vmatpush2.msra.mxu0 0.0
    %735 = vmatprep.subr.mxu0 0.0
    %736 = vmatpush2.msra.mxu0 0.0
    %737 = vmatprep.subr.mxu0 0.0
    %738 = vmatpush2.msra.mxu0 0.0
    %739 = vmatprep.subr.mxu0 0.0
    %740 = vmatpush2.msra.mxu0 0.0
    %741 = vmatprep.mubr.f32.mxu0 0.0
    %742 = vmatmul.mubr.f32.gmra.mxu0 %v671
    %v743 = vpop.f32.mrf.mxu0
    %v744 = vadd.f32 0.0, %v743
    %v745 = vpop.f32.mrf.mxu0
    %746 = vmatprep.mubr.f32.mxu0 0.0
    %747 = vmatmul.mubr.f32.gmra.mxu0 %v672
    %v748 = vpop.f32.mrf.mxu0
    %v749 = vadd.f32 0.0, %v748
    %v750 = vpop.f32.mrf.mxu0
    %751 = vmatprep.mubr.f32.mxu0 0.0
    %752 = vmatmul.mubr.f32.gmra.mxu0 %v673
    %v753 = vpop.f32.mrf.mxu0
    %v754 = vadd.f32 0.0, %v753
    %v755 = vpop.f32.mrf.mxu0
    %756 = vmatprep.mubr.f32.mxu0 0.0
    %757 = vmatmul.mubr.f32.gmra.mxu0 %v674
    %v758 = vpop.f32.mrf.mxu0
    %v759 = vadd.f32 0.0, %v758
    %v760 = vpop.f32.mrf.mxu0
    %761 = vdwg.mxu0
    %v762 = vadd.f32 %v744, %v749
    %v763 = vadd.f32 %v762, %v754
    %v764 = vadd.f32 %v763, %v759
    %v765 = vrot.slane %v764, 4
    %v766 = vadd.f32 %v764, %v765
    %v767 = vrot.slane %v766, 2
    %v768 = vadd.f32 %v766, %v767
    %v769 = vrot.slane %v768, 1
    %v770 = vadd.f32 %v768, %v769
    %v771 = vmul.f32 %v671, %v671
    %v772 = vmul.f32 %v672, %v672
    %v773 = vmul.f32 %v673, %v673
    %v774 = vmul.f32 %v674, %v674
    %775 = vmatprep.subr.mxu0 0.0
    %776 = vmatpush1.msra.mxu0 %v170
    %777 = vmatprep.subr.mxu0 0.0
    %778 = vmatpush1.msra.mxu0 %v169
    %779 = vmatprep.subr.mxu0 0.0
    %780 = vmatpush1.msra.mxu0 %v168
    %781 = vmatprep.subr.mxu0 0.0
    %782 = vmatpush1.msra.mxu0 %v167
    %783 = vmatprep.subr.mxu0 0.0
    %784 = vmatpush1.msra.mxu0 %v166
    %785 = vmatprep.subr.mxu0 0.0
    %786 = vmatpush1.msra.mxu0 %v165
    %787 = vmatprep.subr.mxu0 0.0
    %788 = vmatpush1.msra.mxu0 %v164
    %789 = vmatprep.subr.mxu0 0.0
    %790 = vmatpush1.msra.mxu0 %v163
    %791 = vmatprep.subr.mxu0 0.0
    %792 = vmatpush1.msra.mxu0 %v162
    %793 = vmatprep.subr.mxu0 0.0
    %794 = vmatpush1.msra.mxu0 %v161
    %795 = vmatprep.subr.mxu0 0.0
    %796 = vmatpush1.msra.mxu0 %v160
    %797 = vmatprep.subr.mxu0 0.0
    %798 = vmatpush1.msra.mxu0 %v159
    %799 = vmatprep.subr.mxu0 0.0
    %800 = vmatpush1.msra.mxu0 %v158
    %801 = vmatprep.subr.mxu0 0.0
    %802 = vmatpush1.msra.mxu0 %v157
    %803 = vmatprep.subr.mxu0 0.0
    %804 = vmatpush1.msra.mxu0 %v156
    %805 = vmatprep.subr.mxu0 0.0
    %806 = vmatpush1.msra.mxu0 %v155
    %807 = vmatprep.subr.mxu0 0.0
    %808 = vmatpush2.msra.mxu0 0.0
    %809 = vmatprep.subr.mxu0 0.0
    %810 = vmatpush2.msra.mxu0 0.0
    %811 = vmatprep.subr.mxu0 0.0
    %812 = vmatpush2.msra.mxu0 0.0
    %813 = vmatprep.subr.mxu0 0.0
    %814 = vmatpush2.msra.mxu0 0.0
    %815 = vmatprep.subr.mxu0 0.0
    %816 = vmatpush2.msra.mxu0 0.0
    %817 = vmatprep.subr.mxu0 0.0
    %818 = vmatpush2.msra.mxu0 0.0
    %819 = vmatprep.subr.mxu0 0.0
    %820 = vmatpush2.msra.mxu0 0.0
    %821 = vmatprep.subr.mxu0 0.0
    %822 = vmatpush2.msra.mxu0 0.0
    %823 = vmatprep.subr.mxu0 0.0
    %824 = vmatpush2.msra.mxu0 0.0
    %825 = vmatprep.subr.mxu0 0.0
    %826 = vmatpush2.msra.mxu0 0.0
    %827 = vmatprep.subr.mxu0 0.0
    %828 = vmatpush2.msra.mxu0 0.0
    %829 = vmatprep.subr.mxu0 0.0
    %830 = vmatpush2.msra.mxu0 0.0
    %831 = vmatprep.subr.mxu0 0.0
    %832 = vmatpush2.msra.mxu0 0.0
    %833 = vmatprep.subr.mxu0 0.0
    %834 = vmatpush2.msra.mxu0 0.0
    %835 = vmatprep.subr.mxu0 0.0
    %836 = vmatpush2.msra.mxu0 0.0
    %837 = vmatprep.subr.mxu0 0.0
    %838 = vmatpush2.msra.mxu0 0.0
    %839 = vmatprep.mubr.f32.mxu0 0.0
    %840 = vmatmul.mubr.f32.gmra.mxu0 %v771
    %v841 = vpop.f32.mrf.mxu0
    %v842 = vadd.f32 0.0, %v841
    %v843 = vpop.f32.mrf.mxu0
    %844 = vmatprep.mubr.f32.mxu0 0.0
    %845 = vmatmul.mubr.f32.gmra.mxu0 %v772
    %v846 = vpop.f32.mrf.mxu0
    %v847 = vadd.f32 0.0, %v846
    %v848 = vpop.f32.mrf.mxu0
    %849 = vmatprep.mubr.f32.mxu0 0.0
    %850 = vmatmul.mubr.f32.gmra.mxu0 %v773
    %v851 = vpop.f32.mrf.mxu0
    %v852 = vadd.f32 0.0, %v851
    %v853 = vpop.f32.mrf.mxu0
    %854 = vmatprep.mubr.f32.mxu0 0.0
    %855 = vmatmul.mubr.f32.gmra.mxu0 %v774
    %v856 = vpop.f32.mrf.mxu0
    %v857 = vadd.f32 0.0, %v856
    %v858 = vpop.f32.mrf.mxu0
    %859 = vdwg.mxu0
    %v860 = vadd.f32 %v842, %v847
    %v861 = vadd.f32 %v860, %v852
    %v862 = vadd.f32 %v861, %v857
    %v863 = vrot.slane %v862, 4
    %v864 = vadd.f32 %v862, %v863
    %v865 = vrot.slane %v864, 2
    %v866 = vadd.f32 %v864, %v865
    %v867 = vrot.slane %v866, 1
    %v868 = vadd.f32 %v866, %v867
    %v869 = vmul.f32 %v770, %v770
    %v870 = vsub.f32 %v868, %v869
    %v871 = vsub.f32 %v671, %v770
    %v872 = vsub.f32 %v672, %v770
    %v873 = vsub.f32 %v673, %v770
    %v874 = vsub.f32 %v674, %v770
    %v875 = vadd.f32 %v870, 1e-05
    %v876 = vrsqrt.pop %v875
    %v877 = vmul.f32 %v871, %v876
    %v878 = vmul.f32 %v872, %v876
    %v879 = vmul.f32 %v873, %v876
    %v880 = vmul.f32 %v874, %v876
    %v882 = vlaneseq
    %v883 = vshrl.u32 %v882, 7
    %v884 = vsub.s32 0, %v883
    %v885 = vrot.slane %v675, %v884
    %v887 = vmul.f32 %v877, %v885
    %v888 = vmul.f32 %v878, %v885
    %v889 = vmul.f32 %v879, %v885
    %v890 = vmul.f32 %v880, %v885
    %v892 = vlaneseq
    %v893 = vshrl.u32 %v892, 7
    %v894 = vsub.s32 0, %v893
    %v895 = vrot.slane %v676, %v894
    %v897 = vadd.f32 %v887, %v895
    %v898 = vadd.f32 %v888, %v895
    %v899 = vadd.f32 %v889, %v895
    %v900 = vadd.f32 %v890, %v895
    %v901 = vmax.f32 %v897, 0.0
    %v902 = vmax.f32 %v898, 0.0
    %v903 = vmax.f32 %v899, 0.0
    %v904 = vmax.f32 %v900, 0.0
    %v905 = vld [vmem:[#allocation11] sm:$0xff]
    %v906 = vld [vmem:[#allocation11 + $0x8] sm:$0xff]
    %v907 = vld [vmem:[#allocation11 + $0x10] sm:$0xff]
    %v908 = vld [vmem:[#allocation11 + $0x18] sm:$0xff]
    %v909 = vld [vmem:[#allocation11 + $0x20] sm:$0xff]
    %v910 = vld [vmem:[#allocation11 + $0x28] sm:$0xff]
    %v911 = vld [vmem:[#allocation11 + $0x30] sm:$0xff]
    %v912 = vld [vmem:[#allocation11 + $0x38] sm:$0xff]
    %v913 = vld [vmem:[#allocation11 + $0x40] sm:$0xff]
    %v914 = vld [vmem:[#allocation11 + $0x48] sm:$0xff]
    %v915 = vld [vmem:[#allocation11 + $0x50] sm:$0xff]
    %v916 = vld [vmem:[#allocation11 + $0x58] sm:$0xff]
    %v917 = vld [vmem:[#allocation11 + $0x60] sm:$0xff]
    %v918 = vld [vmem:[#allocation11 + $0x68] sm:$0xff]
    %v919 = vld [vmem:[#allocation11 + $0x70] sm:$0xff]
    %v920 = vld [vmem:[#allocation11 + $0x78] sm:$0xff]
    %921 = vmatprep.subr.mxu0 0.0
    %922 = vmatpush1.msra.mxu0 %v920
    %923 = vmatprep.subr.mxu0 0.0
    %924 = vmatpush1.msra.mxu0 %v919
    %925 = vmatprep.subr.mxu0 0.0
    %926 = vmatpush1.msra.mxu0 %v918
    %927 = vmatprep.subr.mxu0 0.0
    %928 = vmatpush1.msra.mxu0 %v917
    %929 = vmatprep.subr.mxu0 0.0
    %930 = vmatpush1.msra.mxu0 %v916
    %931 = vmatprep.subr.mxu0 0.0
    %932 = vmatpush1.msra.mxu0 %v915
    %933 = vmatprep.subr.mxu0 0.0
    %934 = vmatpush1.msra.mxu0 %v914
    %935 = vmatprep.subr.mxu0 0.0
    %936 = vmatpush1.msra.mxu0 %v913
    %937 = vmatprep.subr.mxu0 0.0
    %938 = vmatpush1.msra.mxu0 %v912
    %939 = vmatprep.subr.mxu0 0.0
    %940 = vmatpush1.msra.mxu0 %v911
    %941 = vmatprep.subr.mxu0 0.0
    %942 = vmatpush1.msra.mxu0 %v910
    %943 = vmatprep.subr.mxu0 0.0
    %944 = vmatpush1.msra.mxu0 %v909
    %945 = vmatprep.subr.mxu0 0.0
    %946 = vmatpush1.msra.mxu0 %v908
    %947 = vmatprep.subr.mxu0 0.0
    %948 = vmatpush1.msra.mxu0 %v907
    %949 = vmatprep.subr.mxu0 0.0
    %950 = vmatpush1.msra.mxu0 %v906
    %951 = vmatprep.subr.mxu0 0.0
    %952 = vmatpush1.msra.mxu0 %v905
    %953 = vmatprep.subr.mxu0 0.0
    %954 = vmatpush2.msra.mxu0 0.0
    %955 = vmatprep.subr.mxu0 0.0
    %956 = vmatpush2.msra.mxu0 0.0
    %957 = vmatprep.subr.mxu0 0.0
    %958 = vmatpush2.msra.mxu0 0.0
    %959 = vmatprep.subr.mxu0 0.0
    %960 = vmatpush2.msra.mxu0 0.0
    %961 = vmatprep.subr.mxu0 0.0
    %962 = vmatpush2.msra.mxu0 0.0
    %963 = vmatprep.subr.mxu0 0.0
    %964 = vmatpush2.msra.mxu0 0.0
    %965 = vmatprep.subr.mxu0 0.0
    %966 = vmatpush2.msra.mxu0 0.0
    %967 = vmatprep.subr.mxu0 0.0
    %968 = vmatpush2.msra.mxu0 0.0
    %969 = vmatprep.subr.mxu0 0.0
    %970 = vmatpush2.msra.mxu0 0.0
    %971 = vmatprep.subr.mxu0 0.0
    %972 = vmatpush2.msra.mxu0 0.0
    %973 = vmatprep.subr.mxu0 0.0
    %974 = vmatpush2.msra.mxu0 0.0
    %975 = vmatprep.subr.mxu0 0.0
    %976 = vmatpush2.msra.mxu0 0.0
    %977 = vmatprep.subr.mxu0 0.0
    %978 = vmatpush2.msra.mxu0 0.0
    %979 = vmatprep.subr.mxu0 0.0
    %980 = vmatpush2.msra.mxu0 0.0
    %981 = vmatprep.subr.mxu0 0.0
    %982 = vmatpush2.msra.mxu0 0.0
    %983 = vmatprep.subr.mxu0 0.0
    %984 = vmatpush2.msra.mxu0 0.0
    %985 = vmatprep.mubr.f32.mxu0 0.0
    %986 = vmatmul.mubr.f32.gmra.mxu0 %v901
    %v987 = vpop.f32.mrf.mxu0
    %v988 = vadd.f32 0.0, %v987
    %v989 = vpop.f32.mrf.mxu0
    %990 = vmatprep.mubr.f32.mxu0 0.0
    %991 = vmatmul.mubr.f32.gmra.mxu0 %v902
    %v992 = vpop.f32.mrf.mxu0
    %v993 = vadd.f32 0.0, %v992
    %v994 = vpop.f32.mrf.mxu0
    %995 = vmatprep.mubr.f32.mxu0 0.0
    %996 = vmatmul.mubr.f32.gmra.mxu0 %v903
    %v997 = vpop.f32.mrf.mxu0
    %v998 = vadd.f32 0.0, %v997
    %v999 = vpop.f32.mrf.mxu0
    %1000 = vmatprep.mubr.f32.mxu0 0.0
    %1001 = vmatmul.mubr.f32.gmra.mxu0 %v904
    %v1002 = vpop.f32.mrf.mxu0
    %v1003 = vadd.f32 0.0, %v1002
    %v1004 = vpop.f32.mrf.mxu0
    %1005 = vdwg.mxu0
    %s1006 = scalar_lea.vmem [#allocation11], 128
    %v1007 = vld [vmem:[%s1006] sm:$0xff]
    %v1008 = vld [vmem:[%s1006 + $0x8] sm:$0xff]
    %v1009 = vld [vmem:[%s1006 + $0x10] sm:$0xff]
    %v1010 = vld [vmem:[%s1006 + $0x18] sm:$0xff]
    %v1011 = vld [vmem:[%s1006 + $0x20] sm:$0xff]
    %v1012 = vld [vmem:[%s1006 + $0x28] sm:$0xff]
    %v1013 = vld [vmem:[%s1006 + $0x30] sm:$0xff]
    %v1014 = vld [vmem:[%s1006 + $0x38] sm:$0xff]
    %v1015 = vld [vmem:[%s1006 + $0x40] sm:$0xff]
    %v1016 = vld [vmem:[%s1006 + $0x48] sm:$0xff]
    %v1017 = vld [vmem:[%s1006 + $0x50] sm:$0xff]
    %v1018 = vld [vmem:[%s1006 + $0x58] sm:$0xff]
    %v1019 = vld [vmem:[%s1006 + $0x60] sm:$0xff]
    %v1020 = vld [vmem:[%s1006 + $0x68] sm:$0xff]
    %v1021 = vld [vmem:[%s1006 + $0x70] sm:$0xff]
    %v1022 = vld [vmem:[%s1006 + $0x78] sm:$0xff]
    %s1023 = scalar_lea.vmem [#allocation11], 256
    %v1024 = vld [vmem:[%s1023] sm:$0xff]
    %v1025 = vld [vmem:[%s1023 + $0x8] sm:$0xff]
    %v1026 = vld [vmem:[%s1023 + $0x10] sm:$0xff]
    %v1027 = vld [vmem:[%s1023 + $0x18] sm:$0xff]
    %v1028 = vld [vmem:[%s1023 + $0x20] sm:$0xff]
    %v1029 = vld [vmem:[%s1023 + $0x28] sm:$0xff]
    %v1030 = vld [vmem:[%s1023 + $0x30] sm:$0xff]
    %v1031 = vld [vmem:[%s1023 + $0x38] sm:$0xff]
    %v1032 = vld [vmem:[%s1023 + $0x40] sm:$0xff]
    %v1033 = vld [vmem:[%s1023 + $0x48] sm:$0xff]
    %v1034 = vld [vmem:[%s1023 + $0x50] sm:$0xff]
    %v1035 = vld [vmem:[%s1023 + $0x58] sm:$0xff]
    %v1036 = vld [vmem:[%s1023 + $0x60] sm:$0xff]
    %v1037 = vld [vmem:[%s1023 + $0x68] sm:$0xff]
    %v1038 = vld [vmem:[%s1023 + $0x70] sm:$0xff]
    %v1039 = vld [vmem:[%s1023 + $0x78] sm:$0xff]
    %1040 = vmatprep.subr.mxu0 0.0
    %1041 = vmatpush1.msra.mxu0 %v1039
    %1042 = vmatprep.subr.mxu0 0.0
    %1043 = vmatpush1.msra.mxu0 %v1038
    %1044 = vmatprep.subr.mxu0 0.0
    %1045 = vmatpush1.msra.mxu0 %v1037
    %1046 = vmatprep.subr.mxu0 0.0
    %1047 = vmatpush1.msra.mxu0 %v1036
    %1048 = vmatprep.subr.mxu0 0.0
    %1049 = vmatpush1.msra.mxu0 %v1035
    %1050 = vmatprep.subr.mxu0 0.0
    %1051 = vmatpush1.msra.mxu0 %v1034
    %1052 = vmatprep.subr.mxu0 0.0
    %1053 = vmatpush1.msra.mxu0 %v1033
    %1054 = vmatprep.subr.mxu0 0.0
    %1055 = vmatpush1.msra.mxu0 %v1032
    %1056 = vmatprep.subr.mxu0 0.0
    %1057 = vmatpush1.msra.mxu0 %v1031
    %1058 = vmatprep.subr.mxu0 0.0
    %1059 = vmatpush1.msra.mxu0 %v1030
    %1060 = vmatprep.subr.mxu0 0.0
    %1061 = vmatpush1.msra.mxu0 %v1029
    %1062 = vmatprep.subr.mxu0 0.0
    %1063 = vmatpush1.msra.mxu0 %v1028
    %1064 = vmatprep.subr.mxu0 0.0
    %1065 = vmatpush1.msra.mxu0 %v1027
    %1066 = vmatprep.subr.mxu0 0.0
    %1067 = vmatpush1.msra.mxu0 %v1026
    %1068 = vmatprep.subr.mxu0 0.0
    %1069 = vmatpush1.msra.mxu0 %v1025
    %1070 = vmatprep.subr.mxu0 0.0
    %1071 = vmatpush1.msra.mxu0 %v1024
    %1072 = vmatprep.subr.mxu0 0.0
    %1073 = vmatpush2.msra.mxu0 0.0
    %1074 = vmatprep.subr.mxu0 0.0
    %1075 = vmatpush2.msra.mxu0 0.0
    %1076 = vmatprep.subr.mxu0 0.0
    %1077 = vmatpush2.msra.mxu0 0.0
    %1078 = vmatprep.subr.mxu0 0.0
    %1079 = vmatpush2.msra.mxu0 0.0
    %1080 = vmatprep.subr.mxu0 0.0
    %1081 = vmatpush2.msra.mxu0 0.0
    %1082 = vmatprep.subr.mxu0 0.0
    %1083 = vmatpush2.msra.mxu0 0.0
    %1084 = vmatprep.subr.mxu0 0.0
    %1085 = vmatpush2.msra.mxu0 0.0
    %1086 = vmatprep.subr.mxu0 0.0
    %1087 = vmatpush2.msra.mxu0 0.0
    %1088 = vmatprep.subr.mxu0 0.0
    %1089 = vmatpush2.msra.mxu0 0.0
    %1090 = vmatprep.subr.mxu0 0.0
    %1091 = vmatpush2.msra.mxu0 0.0
    %1092 = vmatprep.subr.mxu0 0.0
    %1093 = vmatpush2.msra.mxu0 0.0
    %1094 = vmatprep.subr.mxu0 0.0
    %1095 = vmatpush2.msra.mxu0 0.0
    %1096 = vmatprep.subr.mxu0 0.0
    %1097 = vmatpush2.msra.mxu0 0.0
    %1098 = vmatprep.subr.mxu0 0.0
    %1099 = vmatpush2.msra.mxu0 0.0
    %1100 = vmatprep.subr.mxu0 0.0
    %1101 = vmatpush2.msra.mxu0 0.0
    %1102 = vmatprep.subr.mxu0 0.0
    %1103 = vmatpush2.msra.mxu0 0.0
    %1104 = vmatprep.mubr.f32.mxu0 0.0
    %1105 = vmatmul.mubr.f32.gmra.mxu0 %v901
    %v1106 = vpop.f32.mrf.mxu0
    %v1107 = vadd.f32 0.0, %v1106
    %v1108 = vpop.f32.mrf.mxu0
    %1109 = vmatprep.mubr.f32.mxu0 0.0
    %1110 = vmatmul.mubr.f32.gmra.mxu0 %v902
    %v1111 = vpop.f32.mrf.mxu0
    %v1112 = vadd.f32 0.0, %v1111
    %v1113 = vpop.f32.mrf.mxu0
    %1114 = vmatprep.mubr.f32.mxu0 0.0
    %1115 = vmatmul.mubr.f32.gmra.mxu0 %v903
    %v1116 = vpop.f32.mrf.mxu0
    %v1117 = vadd.f32 0.0, %v1116
    %v1118 = vpop.f32.mrf.mxu0
    %1119 = vmatprep.mubr.f32.mxu0 0.0
    %1120 = vmatmul.mubr.f32.gmra.mxu0 %v904
    %v1121 = vpop.f32.mrf.mxu0
    %v1122 = vadd.f32 0.0, %v1121
    %v1123 = vpop.f32.mrf.mxu0
    %1124 = vdwg.mxu0
    %1125 = vmatprep.subr.mxu0 0.0
    %1126 = vmatpush1.msra.mxu0 0.0
    %1127 = vmatprep.subr.mxu0 0.0
    %1128 = vmatpush1.msra.mxu0 0.0
    %1129 = vmatprep.subr.mxu0 0.0
    %1130 = vmatpush1.msra.mxu0 0.0
    %1131 = vmatprep.subr.mxu0 0.0
    %1132 = vmatpush1.msra.mxu0 0.0
    %1133 = vmatprep.subr.mxu0 0.0
    %1134 = vmatpush1.msra.mxu0 0.0
    %1135 = vmatprep.subr.mxu0 0.0
    %1136 = vmatpush1.msra.mxu0 0.0
    %1137 = vmatprep.subr.mxu0 0.0
    %1138 = vmatpush1.msra.mxu0 0.0
    %1139 = vmatprep.subr.mxu0 0.0
    %1140 = vmatpush1.msra.mxu0 0.0
    %1141 = vmatprep.subr.mxu0 0.0
    %1142 = vmatpush1.msra.mxu0 0.0
    %1143 = vmatprep.subr.mxu0 0.0
    %1144 = vmatpush1.msra.mxu0 0.0
    %1145 = vmatprep.subr.mxu0 0.0
    %1146 = vmatpush1.msra.mxu0 0.0
    %1147 = vmatprep.subr.mxu0 0.0
    %1148 = vmatpush1.msra.mxu0 0.0
    %1149 = vmatprep.subr.mxu0 0.0
    %1150 = vmatpush1.msra.mxu0 %v1003
    %1151 = vmatprep.subr.mxu0 0.0
    %1152 = vmatpush1.msra.mxu0 %v998
    %1153 = vmatprep.subr.mxu0 0.0
    %1154 = vmatpush1.msra.mxu0 %v993
    %1155 = vmatprep.subr.mxu0 0.0
    %1156 = vmatpush1.msra.mxu0 %v988
    %1157 = vmatprep.subr.mxu0 0.0
    %1158 = vmatpush2.msra.mxu0 0.0
    %1159 = vmatprep.subr.mxu0 0.0
    %1160 = vmatpush2.msra.mxu0 0.0
    %1161 = vmatprep.subr.mxu0 0.0
    %1162 = vmatpush2.msra.mxu0 0.0
    %1163 = vmatprep.subr.mxu0 0.0
    %1164 = vmatpush2.msra.mxu0 0.0
    %1165 = vmatprep.subr.mxu0 0.0
    %1166 = vmatpush2.msra.mxu0 0.0
    %1167 = vmatprep.subr.mxu0 0.0
    %1168 = vmatpush2.msra.mxu0 0.0
    %1169 = vmatprep.subr.mxu0 0.0
    %1170 = vmatpush2.msra.mxu0 0.0
    %1171 = vmatprep.subr.mxu0 0.0
    %1172 = vmatpush2.msra.mxu0 0.0
    %1173 = vmatprep.subr.mxu0 0.0
    %1174 = vmatpush2.msra.mxu0 0.0
    %1175 = vmatprep.subr.mxu0 0.0
    %1176 = vmatpush2.msra.mxu0 0.0
    %1177 = vmatprep.subr.mxu0 0.0
    %1178 = vmatpush2.msra.mxu0 0.0
    %1179 = vmatprep.subr.mxu0 0.0
    %1180 = vmatpush2.msra.mxu0 0.0
    %1181 = vmatprep.subr.mxu0 0.0
    %1182 = vmatpush2.msra.mxu0 0.0
    %1183 = vmatprep.subr.mxu0 0.0
    %1184 = vmatpush2.msra.mxu0 0.0
    %1185 = vmatprep.subr.mxu0 0.0
    %1186 = vmatpush2.msra.mxu0 0.0
    %1187 = vmatprep.subr.mxu0 0.0
    %1188 = vmatpush2.msra.mxu0 0.0
    %1189 = vmatprep.mubr.f32.mxu0 0.0
    %1190 = vmatmul.mubr.f32.gmra.mxu0 %v382
    %v1191 = vpop.f32.mrf.mxu0
    %v1192 = vadd.f32 0.0, %v1191
    %v1193 = vpop.f32.mrf.mxu0
    %1194 = vmatprep.mubr.f32.mxu0 0.0
    %1195 = vmatmul.mubr.f32.gmra.mxu0 %v385
    %v1196 = vpop.f32.mrf.mxu0
    %v1197 = vadd.f32 0.0, %v1196
    %v1198 = vpop.f32.mrf.mxu0
    %1199 = vmatprep.mubr.f32.mxu0 0.0
    %1200 = vmatmul.mubr.f32.gmra.mxu0 %v388
    %v1201 = vpop.f32.mrf.mxu0
    %v1202 = vadd.f32 0.0, %v1201
    %v1203 = vpop.f32.mrf.mxu0
    %1204 = vmatprep.mubr.f32.mxu0 0.0
    %1205 = vmatmul.mubr.f32.gmra.mxu0 %v391
    %v1206 = vpop.f32.mrf.mxu0
    %v1207 = vadd.f32 0.0, %v1206
    %v1208 = vpop.f32.mrf.mxu0
    %1209 = vdwg.mxu0
    %1210 = vmatprep.subr.mxu0 0.0
    %1211 = vmatpush1.msra.mxu0 %v1022
    %1212 = vmatprep.subr.mxu0 0.0
    %1213 = vmatpush1.msra.mxu0 %v1021
    %1214 = vmatprep.subr.mxu0 0.0
    %1215 = vmatpush1.msra.mxu0 %v1020
    %1216 = vmatprep.subr.mxu0 0.0
    %1217 = vmatpush1.msra.mxu0 %v1019
    %1218 = vmatprep.subr.mxu0 0.0
    %1219 = vmatpush1.msra.mxu0 %v1018
    %1220 = vmatprep.subr.mxu0 0.0
    %1221 = vmatpush1.msra.mxu0 %v1017
    %1222 = vmatprep.subr.mxu0 0.0
    %1223 = vmatpush1.msra.mxu0 %v1016
    %1224 = vmatprep.subr.mxu0 0.0
    %1225 = vmatpush1.msra.mxu0 %v1015
    %1226 = vmatprep.subr.mxu0 0.0
    %1227 = vmatpush1.msra.mxu0 %v1014
    %1228 = vmatprep.subr.mxu0 0.0
    %1229 = vmatpush1.msra.mxu0 %v1013
    %1230 = vmatprep.subr.mxu0 0.0
    %1231 = vmatpush1.msra.mxu0 %v1012
    %1232 = vmatprep.subr.mxu0 0.0
    %1233 = vmatpush1.msra.mxu0 %v1011
    %1234 = vmatprep.subr.mxu0 0.0
    %1235 = vmatpush1.msra.mxu0 %v1010
    %1236 = vmatprep.subr.mxu0 0.0
    %1237 = vmatpush1.msra.mxu0 %v1009
    %1238 = vmatprep.subr.mxu0 0.0
    %1239 = vmatpush1.msra.mxu0 %v1008
    %1240 = vmatprep.subr.mxu0 0.0
    %1241 = vmatpush1.msra.mxu0 %v1007
    %1242 = vmatprep.subr.mxu0 0.0
    %1243 = vmatpush2.msra.mxu0 0.0
    %1244 = vmatprep.subr.mxu0 0.0
    %1245 = vmatpush2.msra.mxu0 0.0
    %1246 = vmatprep.subr.mxu0 0.0
    %1247 = vmatpush2.msra.mxu0 0.0
    %1248 = vmatprep.subr.mxu0 0.0
    %1249 = vmatpush2.msra.mxu0 0.0
    %1250 = vmatprep.subr.mxu0 0.0
    %1251 = vmatpush2.msra.mxu0 0.0
    %1252 = vmatprep.subr.mxu0 0.0
    %1253 = vmatpush2.msra.mxu0 0.0
    %1254 = vmatprep.subr.mxu0 0.0
    %1255 = vmatpush2.msra.mxu0 0.0
    %1256 = vmatprep.subr.mxu0 0.0
    %1257 = vmatpush2.msra.mxu0 0.0
    %1258 = vmatprep.subr.mxu0 0.0
    %1259 = vmatpush2.msra.mxu0 0.0
    %1260 = vmatprep.subr.mxu0 0.0
    %1261 = vmatpush2.msra.mxu0 0.0
    %1262 = vmatprep.subr.mxu0 0.0
    %1263 = vmatpush2.msra.mxu0 0.0
    %1264 = vmatprep.subr.mxu0 0.0
    %1265 = vmatpush2.msra.mxu0 0.0
    %1266 = vmatprep.subr.mxu0 0.0
    %1267 = vmatpush2.msra.mxu0 0.0
    %1268 = vmatprep.subr.mxu0 0.0
    %1269 = vmatpush2.msra.mxu0 0.0
    %1270 = vmatprep.subr.mxu0 0.0
    %1271 = vmatpush2.msra.mxu0 0.0
    %1272 = vmatprep.subr.mxu0 0.0
    %1273 = vmatpush2.msra.mxu0 0.0
    %1274 = vmatprep.mubr.f32.mxu0 0.0
    %1275 = vmatmul.mubr.f32.gmra.mxu0 %v901
    %v1276 = vpop.f32.mrf.mxu0
    %v1277 = vadd.f32 %v1192, %v1276
    %v1278 = vpop.f32.mrf.mxu0
    %1279 = vmatprep.mubr.f32.mxu0 0.0
    %1280 = vmatmul.mubr.f32.gmra.mxu0 %v902
    %v1281 = vpop.f32.mrf.mxu0
    %v1282 = vadd.f32 %v1197, %v1281
    %v1283 = vpop.f32.mrf.mxu0
    %1284 = vmatprep.mubr.f32.mxu0 0.0
    %1285 = vmatmul.mubr.f32.gmra.mxu0 %v903
    %v1286 = vpop.f32.mrf.mxu0
    %v1287 = vadd.f32 %v1202, %v1286
    %v1288 = vpop.f32.mrf.mxu0
    %1289 = vmatprep.mubr.f32.mxu0 0.0
    %1290 = vmatmul.mubr.f32.gmra.mxu0 %v904
    %v1291 = vpop.f32.mrf.mxu0
    %v1292 = vadd.f32 %v1207, %v1291
    %v1293 = vpop.f32.mrf.mxu0
    %1294 = vdwg.mxu0
    %1295 = vmatprep.subr.mxu0 0.0
    %1296 = vmatpush1.msra.mxu0 0.0
    %1297 = vmatprep.subr.mxu0 0.0
    %1298 = vmatpush1.msra.mxu0 0.0
    %1299 = vmatprep.subr.mxu0 0.0
    %1300 = vmatpush1.msra.mxu0 0.0
    %1301 = vmatprep.subr.mxu0 0.0
    %1302 = vmatpush1.msra.mxu0 0.0
    %1303 = vmatprep.subr.mxu0 0.0
    %1304 = vmatpush1.msra.mxu0 0.0
    %1305 = vmatprep.subr.mxu0 0.0
    %1306 = vmatpush1.msra.mxu0 0.0
    %1307 = vmatprep.subr.mxu0 0.0
    %1308 = vmatpush1.msra.mxu0 0.0
    %1309 = vmatprep.subr.mxu0 0.0
    %1310 = vmatpush1.msra.mxu0 0.0
    %1311 = vmatprep.subr.mxu0 0.0
    %1312 = vmatpush1.msra.mxu0 0.0
    %1313 = vmatprep.subr.mxu0 0.0
    %1314 = vmatpush1.msra.mxu0 0.0
    %1315 = vmatprep.subr.mxu0 0.0
    %1316 = vmatpush1.msra.mxu0 0.0
    %1317 = vmatprep.subr.mxu0 0.0
    %1318 = vmatpush1.msra.mxu0 0.0
    %1319 = vmatprep.subr.mxu0 0.0
    %1320 = vmatpush1.msra.mxu0 %v1122
    %1321 = vmatprep.subr.mxu0 0.0
    %1322 = vmatpush1.msra.mxu0 %v1117
    %1323 = vmatprep.subr.mxu0 0.0
    %1324 = vmatpush1.msra.mxu0 %v1112
    %1325 = vmatprep.subr.mxu0 0.0
    %1326 = vmatpush1.msra.mxu0 %v1107
    %1327 = vmatprep.subr.mxu0 0.0
    %1328 = vmatpush2.msra.mxu0 0.0
    %1329 = vmatprep.subr.mxu0 0.0
    %1330 = vmatpush2.msra.mxu0 0.0
    %1331 = vmatprep.subr.mxu0 0.0
    %1332 = vmatpush2.msra.mxu0 0.0
    %1333 = vmatprep.subr.mxu0 0.0
    %1334 = vmatpush2.msra.mxu0 0.0
    %1335 = vmatprep.subr.mxu0 0.0
    %1336 = vmatpush2.msra.mxu0 0.0
    %1337 = vmatprep.subr.mxu0 0.0
    %1338 = vmatpush2.msra.mxu0 0.0
    %1339 = vmatprep.subr.mxu0 0.0
    %1340 = vmatpush2.msra.mxu0 0.0
    %1341 = vmatprep.subr.mxu0 0.0
    %1342 = vmatpush2.msra.mxu0 0.0
    %1343 = vmatprep.subr.mxu0 0.0
    %1344 = vmatpush2.msra.mxu0 0.0
    %1345 = vmatprep.subr.mxu0 0.0
    %1346 = vmatpush2.msra.mxu0 0.0
    %1347 = vmatprep.subr.mxu0 0.0
    %1348 = vmatpush2.msra.mxu0 0.0
    %1349 = vmatprep.subr.mxu0 0.0
    %1350 = vmatpush2.msra.mxu0 0.0
    %1351 = vmatprep.subr.mxu0 0.0
    %1352 = vmatpush2.msra.mxu0 0.0
    %1353 = vmatprep.subr.mxu0 0.0
    %1354 = vmatpush2.msra.mxu0 0.0
    %1355 = vmatprep.subr.mxu0 0.0
    %1356 = vmatpush2.msra.mxu0 0.0
    %1357 = vmatprep.subr.mxu0 0.0
    %1358 = vmatpush2.msra.mxu0 0.0
    %1359 = vmatprep.mubr.f32.mxu0 0.0
    %1360 = vmatmul.mubr.f32.gmra.mxu0 %v564
    %v1361 = vpop.f32.mrf.mxu0
    %v1362 = vadd.f32 0.0, %v1361
    %v1363 = vpop.f32.mrf.mxu0
    %1364 = vmatprep.mubr.f32.mxu0 0.0
    %1365 = vmatmul.mubr.f32.gmra.mxu0 %v567
    %v1366 = vpop.f32.mrf.mxu0
    %v1367 = vadd.f32 0.0, %v1366
    %v1368 = vpop.f32.mrf.mxu0
    %1369 = vmatprep.mubr.f32.mxu0 0.0
    %1370 = vmatmul.mubr.f32.gmra.mxu0 %v570
    %v1371 = vpop.f32.mrf.mxu0
    %v1372 = vadd.f32 0.0, %v1371
    %v1373 = vpop.f32.mrf.mxu0
    %1374 = vmatprep.mubr.f32.mxu0 0.0
    %1375 = vmatmul.mubr.f32.gmra.mxu0 %v573
    %v1376 = vpop.f32.mrf.mxu0
    %v1377 = vadd.f32 0.0, %v1376
    %v1378 = vpop.f32.mrf.mxu0
    %1379 = vdwg.mxu0
    %v1380 = vadd.f32 %v1277, %v1362
    %v1381 = vadd.f32 %v1282, %v1367
    %v1382 = vadd.f32 %v1287, %v1372
    %v1383 = vadd.f32 %v1292, %v1377
    %v1384 = vld [vmem:[%s9] sm:$0x1]
    %v1386 = vlaneseq
    %v1387 = vshrl.u32 %v1386, 7
    %v1388 = vsub.s32 0, %v1387
    %v1389 = vrot.slane %v1384, %v1388
    %v1391 = vadd.f32 %v1380, %v1389
    %v1392 = vadd.f32 %v1381, %v1389
    %v1393 = vadd.f32 %v1382, %v1389
    %v1394 = vadd.f32 %v1383, %v1389
    %v1395 = vld [vmem:[%s10] sm:$0x1]
    %v1396 = vld [vmem:[%s11] sm:$0x1]
    %1397 = vmatprep.subr.mxu0 0.0
    %1398 = vmatpush1.msra.mxu0 %v170
    %1399 = vmatprep.subr.mxu0 0.0
    %1400 = vmatpush1.msra.mxu0 %v169
    %1401 = vmatprep.subr.mxu0 0.0
    %1402 = vmatpush1.msra.mxu0 %v168
    %1403 = vmatprep.subr.mxu0 0.0
    %1404 = vmatpush1.msra.mxu0 %v167
    %1405 = vmatprep.subr.mxu0 0.0
    %1406 = vmatpush1.msra.mxu0 %v166
    %1407 = vmatprep.subr.mxu0 0.0
    %1408 = vmatpush1.msra.mxu0 %v165
    %1409 = vmatprep.subr.mxu0 0.0
    %1410 = vmatpush1.msra.mxu0 %v164
    %1411 = vmatprep.subr.mxu0 0.0
    %1412 = vmatpush1.msra.mxu0 %v163
    %1413 = vmatprep.subr.mxu0 0.0
    %1414 = vmatpush1.msra.mxu0 %v162
    %1415 = vmatprep.subr.mxu0 0.0
    %1416 = vmatpush1.msra.mxu0 %v161
    %1417 = vmatprep.subr.mxu0 0.0
    %1418 = vmatpush1.msra.mxu0 %v160
    %1419 = vmatprep.subr.mxu0 0.0
    %1420 = vmatpush1.msra.mxu0 %v159
    %1421 = vmatprep.subr.mxu0 0.0
    %1422 = vmatpush1.msra.mxu0 %v158
    %1423 = vmatprep.subr.mxu0 0.0
    %1424 = vmatpush1.msra.mxu0 %v157
    %1425 = vmatprep.subr.mxu0 0.0
    %1426 = vmatpush1.msra.mxu0 %v156
    %1427 = vmatprep.subr.mxu0 0.0
    %1428 = vmatpush1.msra.mxu0 %v155
    %1429 = vmatprep.subr.mxu0 0.0
    %1430 = vmatpush2.msra.mxu0 0.0
    %1431 = vmatprep.subr.mxu0 0.0
    %1432 = vmatpush2.msra.mxu0 0.0
    %1433 = vmatprep.subr.mxu0 0.0
    %1434 = vmatpush2.msra.mxu0 0.0
    %1435 = vmatprep.subr.mxu0 0.0
    %1436 = vmatpush2.msra.mxu0 0.0
    %1437 = vmatprep.subr.mxu0 0.0
    %1438 = vmatpush2.msra.mxu0 0.0
    %1439 = vmatprep.subr.mxu0 0.0
    %1440 = vmatpush2.msra.mxu0 0.0
    %1441 = vmatprep.subr.mxu0 0.0
    %1442 = vmatpush2.msra.mxu0 0.0
    %1443 = vmatprep.subr.mxu0 0.0
    %1444 = vmatpush2.msra.mxu0 0.0
    %1445 = vmatprep.subr.mxu0 0.0
    %1446 = vmatpush2.msra.mxu0 0.0
    %1447 = vmatprep.subr.mxu0 0.0
    %1448 = vmatpush2.msra.mxu0 0.0
    %1449 = vmatprep.subr.mxu0 0.0
    %1450 = vmatpush2.msra.mxu0 0.0
    %1451 = vmatprep.subr.mxu0 0.0
    %1452 = vmatpush2.msra.mxu0 0.0
    %1453 = vmatprep.subr.mxu0 0.0
    %1454 = vmatpush2.msra.mxu0 0.0
    %1455 = vmatprep.subr.mxu0 0.0
    %1456 = vmatpush2.msra.mxu0 0.0
    %1457 = vmatprep.subr.mxu0 0.0
    %1458 = vmatpush2.msra.mxu0 0.0
    %1459 = vmatprep.subr.mxu0 0.0
    %1460 = vmatpush2.msra.mxu0 0.0
    %1461 = vmatprep.mubr.f32.mxu0 0.0
    %1462 = vmatmul.mubr.f32.gmra.mxu0 %v1391
    %v1463 = vpop.f32.mrf.mxu0
    %v1464 = vadd.f32 0.0, %v1463
    %v1465 = vpop.f32.mrf.mxu0
    %1466 = vmatprep.mubr.f32.mxu0 0.0
    %1467 = vmatmul.mubr.f32.gmra.mxu0 %v1392
    %v1468 = vpop.f32.mrf.mxu0
    %v1469 = vadd.f32 0.0, %v1468
    %v1470 = vpop.f32.mrf.mxu0
    %1471 = vmatprep.mubr.f32.mxu0 0.0
    %1472 = vmatmul.mubr.f32.gmra.mxu0 %v1393
    %v1473 = vpop.f32.mrf.mxu0
    %v1474 = vadd.f32 0.0, %v1473
    %v1475 = vpop.f32.mrf.mxu0
    %1476 = vmatprep.mubr.f32.mxu0 0.0
    %1477 = vmatmul.mubr.f32.gmra.mxu0 %v1394
    %v1478 = vpop.f32.mrf.mxu0
    %v1479 = vadd.f32 0.0, %v1478
    %v1480 = vpop.f32.mrf.mxu0
    %1481 = vdwg.mxu0
    %v1482 = vadd.f32 %v1464, %v1469
    %v1483 = vadd.f32 %v1482, %v1474
    %v1484 = vadd.f32 %v1483, %v1479
    %v1485 = vrot.slane %v1484, 4
    %v1486 = vadd.f32 %v1484, %v1485
    %v1487 = vrot.slane %v1486, 2
    %v1488 = vadd.f32 %v1486, %v1487
    %v1489 = vrot.slane %v1488, 1
    %v1490 = vadd.f32 %v1488, %v1489
    %v1491 = vmul.f32 %v1391, %v1391
    %v1492 = vmul.f32 %v1392, %v1392
    %v1493 = vmul.f32 %v1393, %v1393
    %v1494 = vmul.f32 %v1394, %v1394
    %1495 = vmatprep.subr.mxu0 0.0
    %1496 = vmatpush1.msra.mxu0 %v170
    %1497 = vmatprep.subr.mxu0 0.0
    %1498 = vmatpush1.msra.mxu0 %v169
    %1499 = vmatprep.subr.mxu0 0.0
    %1500 = vmatpush1.msra.mxu0 %v168
    %1501 = vmatprep.subr.mxu0 0.0
    %1502 = vmatpush1.msra.mxu0 %v167
    %1503 = vmatprep.subr.mxu0 0.0
    %1504 = vmatpush1.msra.mxu0 %v166
    %1505 = vmatprep.subr.mxu0 0.0
    %1506 = vmatpush1.msra.mxu0 %v165
    %1507 = vmatprep.subr.mxu0 0.0
    %1508 = vmatpush1.msra.mxu0 %v164
    %1509 = vmatprep.subr.mxu0 0.0
    %1510 = vmatpush1.msra.mxu0 %v163
    %1511 = vmatprep.subr.mxu0 0.0
    %1512 = vmatpush1.msra.mxu0 %v162
    %1513 = vmatprep.subr.mxu0 0.0
    %1514 = vmatpush1.msra.mxu0 %v161
    %1515 = vmatprep.subr.mxu0 0.0
    %1516 = vmatpush1.msra.mxu0 %v160
    %1517 = vmatprep.subr.mxu0 0.0
    %1518 = vmatpush1.msra.mxu0 %v159
    %1519 = vmatprep.subr.mxu0 0.0
    %1520 = vmatpush1.msra.mxu0 %v158
    %1521 = vmatprep.subr.mxu0 0.0
    %1522 = vmatpush1.msra.mxu0 %v157
    %1523 = vmatprep.subr.mxu0 0.0
    %1524 = vmatpush1.msra.mxu0 %v156
    %1525 = vmatprep.subr.mxu0 0.0
    %1526 = vmatpush1.msra.mxu0 %v155
    %1527 = vmatprep.subr.mxu0 0.0
    %1528 = vmatpush2.msra.mxu0 0.0
    %1529 = vmatprep.subr.mxu0 0.0
    %1530 = vmatpush2.msra.mxu0 0.0
    %1531 = vmatprep.subr.mxu0 0.0
    %1532 = vmatpush2.msra.mxu0 0.0
    %1533 = vmatprep.subr.mxu0 0.0
    %1534 = vmatpush2.msra.mxu0 0.0
    %1535 = vmatprep.subr.mxu0 0.0
    %1536 = vmatpush2.msra.mxu0 0.0
    %1537 = vmatprep.subr.mxu0 0.0
    %1538 = vmatpush2.msra.mxu0 0.0
    %1539 = vmatprep.subr.mxu0 0.0
    %1540 = vmatpush2.msra.mxu0 0.0
    %1541 = vmatprep.subr.mxu0 0.0
    %1542 = vmatpush2.msra.mxu0 0.0
    %1543 = vmatprep.subr.mxu0 0.0
    %1544 = vmatpush2.msra.mxu0 0.0
    %1545 = vmatprep.subr.mxu0 0.0
    %1546 = vmatpush2.msra.mxu0 0.0
    %1547 = vmatprep.subr.mxu0 0.0
    %1548 = vmatpush2.msra.mxu0 0.0
    %1549 = vmatprep.subr.mxu0 0.0
    %1550 = vmatpush2.msra.mxu0 0.0
    %1551 = vmatprep.subr.mxu0 0.0
    %1552 = vmatpush2.msra.mxu0 0.0
    %1553 = vmatprep.subr.mxu0 0.0
    %1554 = vmatpush2.msra.mxu0 0.0
    %1555 = vmatprep.subr.mxu0 0.0
    %1556 = vmatpush2.msra.mxu0 0.0
    %1557 = vmatprep.subr.mxu0 0.0
    %1558 = vmatpush2.msra.mxu0 0.0
    %1559 = vmatprep.mubr.f32.mxu0 0.0
    %1560 = vmatmul.mubr.f32.gmra.mxu0 %v1491
    %v1561 = vpop.f32.mrf.mxu0
    %v1562 = vadd.f32 0.0, %v1561
    %v1563 = vpop.f32.mrf.mxu0
    %1564 = vmatprep.mubr.f32.mxu0 0.0
    %1565 = vmatmul.mubr.f32.gmra.mxu0 %v1492
    %v1566 = vpop.f32.mrf.mxu0
    %v1567 = vadd.f32 0.0, %v1566
    %v1568 = vpop.f32.mrf.mxu0
    %1569 = vmatprep.mubr.f32.mxu0 0.0
    %1570 = vmatmul.mubr.f32.gmra.mxu0 %v1493
    %v1571 = vpop.f32.mrf.mxu0
    %v1572 = vadd.f32 0.0, %v1571
    %v1573 = vpop.f32.mrf.mxu0
    %1574 = vmatprep.mubr.f32.mxu0 0.0
    %1575 = vmatmul.mubr.f32.gmra.mxu0 %v1494
    %v1576 = vpop.f32.mrf.mxu0
    %v1577 = vadd.f32 0.0, %v1576
    %v1578 = vpop.f32.mrf.mxu0
    %1579 = vdwg.mxu0
    %v1580 = vadd.f32 %v1562, %v1567
    %v1581 = vadd.f32 %v1580, %v1572
    %v1582 = vadd.f32 %v1581, %v1577
    %v1583 = vrot.slane %v1582, 4
    %v1584 = vadd.f32 %v1582, %v1583
    %v1585 = vrot.slane %v1584, 2
    %v1586 = vadd.f32 %v1584, %v1585
    %v1587 = vrot.slane %v1586, 1
    %v1588 = vadd.f32 %v1586, %v1587
    %v1589 = vmul.f32 %v1490, %v1490
    %v1590 = vsub.f32 %v1588, %v1589
    %v1591 = vsub.f32 %v1391, %v1490
    %v1592 = vsub.f32 %v1392, %v1490
    %v1593 = vsub.f32 %v1393, %v1490
    %v1594 = vsub.f32 %v1394, %v1490
    %v1595 = vadd.f32 %v1590, 1e-05
    %v1596 = vrsqrt.pop %v1595
    %v1597 = vmul.f32 %v1591, %v1596
    %v1598 = vmul.f32 %v1592, %v1596
    %v1599 = vmul.f32 %v1593, %v1596
    %v1600 = vmul.f32 %v1594, %v1596
    %v1602 = vlaneseq
    %v1603 = vshrl.u32 %v1602, 7
    %v1604 = vsub.s32 0, %v1603
    %v1605 = vrot.slane %v1395, %v1604
    %v1607 = vmul.f32 %v1597, %v1605
    %v1608 = vmul.f32 %v1598, %v1605
    %v1609 = vmul.f32 %v1599, %v1605
    %v1610 = vmul.f32 %v1600, %v1605
    %v1612 = vlaneseq
    %v1613 = vshrl.u32 %v1612, 7
    %v1614 = vsub.s32 0, %v1613
    %v1615 = vrot.slane %v1396, %v1614
    %v1617 = vadd.f32 %v1607, %v1615
    %v1618 = vadd.f32 %v1608, %v1615
    %v1619 = vadd.f32 %v1609, %v1615
    %v1620 = vadd.f32 %v1610, %v1615
    %v1621 = vld [vmem:[#allocation13] sm:$0xff]
    %v1622 = vld [vmem:[#allocation13 + $0x8] sm:$0xff]
    %v1623 = vld [vmem:[#allocation13 + $0x10] sm:$0xff]
    %v1624 = vld [vmem:[#allocation13 + $0x18] sm:$0xff]
    %v1625 = vld [vmem:[#allocation13 + $0x20] sm:$0xff]
    %v1626 = vld [vmem:[#allocation13 + $0x28] sm:$0xff]
    %v1627 = vld [vmem:[#allocation13 + $0x30] sm:$0xff]
    %v1628 = vld [vmem:[#allocation13 + $0x38] sm:$0xff]
    %v1629 = vld [vmem:[%s13] sm:$0x1]
    %v1631 = vlaneseq
    %v1632 = vshrl.u32 %v1631, 7
    %v1633 = vsub.s32 0, %v1632
    %v1634 = vrot.slane %v1629, %v1633
    %1636 = vmatprep.subr.mxu0 0.0
    %1637 = vmatpush1.msra.mxu0 0.0
    %1638 = vmatprep.subr.mxu0 0.0
    %1639 = vmatpush1.msra.mxu0 0.0
    %1640 = vmatprep.subr.mxu0 0.0
    %1641 = vmatpush1.msra.mxu0 0.0
    %1642 = vmatprep.subr.mxu0 0.0
    %1643 = vmatpush1.msra.mxu0 0.0
    %1644 = vmatprep.subr.mxu0 0.0
    %1645 = vmatpush1.msra.mxu0 0.0
    %1646 = vmatprep.subr.mxu0 0.0
    %1647 = vmatpush1.msra.mxu0 0.0
    %1648 = vmatprep.subr.mxu0 0.0
    %1649 = vmatpush1.msra.mxu0 0.0
    %1650 = vmatprep.subr.mxu0 0.0
    %1651 = vmatpush1.msra.mxu0 0.0
    %1652 = vmatprep.subr.mxu0 0.0
    %1653 = vmatpush1.msra.mxu0 %v1628
    %1654 = vmatprep.subr.mxu0 0.0
    %1655 = vmatpush1.msra.mxu0 %v1627
    %1656 = vmatprep.subr.mxu0 0.0
    %1657 = vmatpush1.msra.mxu0 %v1626
    %1658 = vmatprep.subr.mxu0 0.0
    %1659 = vmatpush1.msra.mxu0 %v1625
    %1660 = vmatprep.subr.mxu0 0.0
    %1661 = vmatpush1.msra.mxu0 %v1624
    %1662 = vmatprep.subr.mxu0 0.0
    %1663 = vmatpush1.msra.mxu0 %v1623
    %1664 = vmatprep.subr.mxu0 0.0
    %1665 = vmatpush1.msra.mxu0 %v1622
    %1666 = vmatprep.subr.mxu0 0.0
    %1667 = vmatpush1.msra.mxu0 %v1621
    %1668 = vmatprep.subr.mxu0 0.0
    %1669 = vmatpush2.msra.mxu0 0.0
    %1670 = vmatprep.subr.mxu0 0.0
    %1671 = vmatpush2.msra.mxu0 0.0
    %1672 = vmatprep.subr.mxu0 0.0
    %1673 = vmatpush2.msra.mxu0 0.0
    %1674 = vmatprep.subr.mxu0 0.0
    %1675 = vmatpush2.msra.mxu0 0.0
    %1676 = vmatprep.subr.mxu0 0.0
    %1677 = vmatpush2.msra.mxu0 0.0
    %1678 = vmatprep.subr.mxu0 0.0
    %1679 = vmatpush2.msra.mxu0 0.0
    %1680 = vmatprep.subr.mxu0 0.0
    %1681 = vmatpush2.msra.mxu0 0.0
    %1682 = vmatprep.subr.mxu0 0.0
    %1683 = vmatpush2.msra.mxu0 0.0
    %1684 = vmatprep.subr.mxu0 0.0
    %1685 = vmatpush2.msra.mxu0 0.0
    %1686 = vmatprep.subr.mxu0 0.0
    %1687 = vmatpush2.msra.mxu0 0.0
    %1688 = vmatprep.subr.mxu0 0.0
    %1689 = vmatpush2.msra.mxu0 0.0
    %1690 = vmatprep.subr.mxu0 0.0
    %1691 = vmatpush2.msra.mxu0 0.0
    %1692 = vmatprep.subr.mxu0 0.0
    %1693 = vmatpush2.msra.mxu0 0.0
    %1694 = vmatprep.subr.mxu0 0.0
    %1695 = vmatpush2.msra.mxu0 0.0
    %1696 = vmatprep.subr.mxu0 0.0
    %1697 = vmatpush2.msra.mxu0 0.0
    %1698 = vmatprep.subr.mxu0 0.0
    %1699 = vmatpush2.msra.mxu0 0.0
    %1700 = vmatprep.mubr.f32.mxu0 0.0
    %1701 = vmatmul.mubr.f32.gmra.mxu0 %v181
    %v1702 = vpop.f32.mrf.mxu0
    %v1703 = vadd.f32 %v1634, %v1702
    %v1704 = vpop.f32.mrf.mxu0
    %1705 = vmatprep.mubr.f32.mxu0 0.0
    %1706 = vmatmul.mubr.f32.gmra.mxu0 %v184
    %v1707 = vpop.f32.mrf.mxu0
    %v1708 = vadd.f32 %v1634, %v1707
    %v1709 = vpop.f32.mrf.mxu0
    %1710 = vmatprep.mubr.f32.mxu0 0.0
    %1711 = vmatmul.mubr.f32.gmra.mxu0 %v187
    %v1712 = vpop.f32.mrf.mxu0
    %v1713 = vadd.f32 %v1634, %v1712
    %v1714 = vpop.f32.mrf.mxu0
    %1715 = vmatprep.mubr.f32.mxu0 0.0
    %1716 = vmatmul.mubr.f32.gmra.mxu0 %v190
    %v1717 = vpop.f32.mrf.mxu0
    %v1718 = vadd.f32 %v1634, %v1717
    %v1719 = vpop.f32.mrf.mxu0
    %1720 = vdwg.mxu0
    %v1721 = vadd.f32 %v1617, %v1703
    %v1722 = vadd.f32 %v1618, %v1708
    %v1723 = vadd.f32 %v1619, %v1713
    %v1724 = vadd.f32 %v1620, %v1718
    %v1725 = vmax.f32 %v1721, 0.0
    %v1726 = vmax.f32 %v1722, 0.0
    %v1727 = vmax.f32 %v1723, 0.0
    %v1728 = vmax.f32 %v1724, 0.0
    %1729 = vst [vmem:[#allocation14] sm:$0xff] %v1725
    %1730 = vst [vmem:[#allocation14 + $0x8] sm:$0xff] %v1726
    %1731 = vst [vmem:[#allocation14 + $0x10] sm:$0xff] %v1727
    %1732 = vst [vmem:[#allocation14 + $0x18] sm:$0xff] %v1728
    // Predicated region
    $region86: #{tpu_custom_call.1} parent=1 // pred_check
      _
    $region87: #{tpu_custom_call.1} parent=1 // pred_check_branch
      %1734 = sbr.rel (0) target = $region89
    $region88: #{tpu_custom_call.1} parent=1 // pred_region
      %s1736 = ssub.s32 512, 512
      %1737 = vsyncadd [#allocation4], %s1736
      %s1738 = sshll.u32 [#allocation14], 4
      %s1739 = int_to_ptr.vmem [resolvable:$true] %s1738
      %1744 = dma.vmem_to_hbm [thread:$0]  %s1739, 512, %s14, [#allocation4], 128, 128, 8
    $region89: #{tpu_custom_call.1} parent=1 // pred_fallthru
      _
    // Predicated region
    $region90: #{tpu_custom_call.1} parent=1 // pred_check
      _
    $region91: #{tpu_custom_call.1} parent=1 // pred_check_branch
      %1746 = sbr.rel (0) target = $region93
    $region92: #{tpu_custom_call.1} parent=1 // pred_region
      %1747 = dma.done [#allocation4], 512
    $region93: #{tpu_custom_call.1} parent=1 // pred_fallthru
      _
    %1748 = vsyncpa [#allocation3], 1
    %1749 = vsyncpa [#allocation6], 1
    %1750 = vsyncpa [#allocation9], 1
    %1751 = vsyncpa [#allocation12], 1
    %1752 = vsyncpa [#allocation4], 1

</llo_original>
